<compile_context>
chip_gen: v5e
topology: v5e:2x2
jax: 0.10.0
libtpu: 0.0.40
codegen_flags: <defaults>
</compile_context>

<pallas_src>
import functools

import jax
import jax.numpy as jnp
from jax import lax
from jax.experimental import pallas as pl
from jax.experimental.pallas import tpu as pltpu


def _round_up(a: int, b: int) -> int:
    return (a + b - 1) // b * b


def _gelu_tanh(x):
    # TODO(synk): nn.GELU() defaults to the exact erf form; erf lowering in Mosaic is not
    # guaranteed, so we use the tanh approximation (max abs deviation ~3e-4) in kernel + ref.
    c = 0.7978845608028654  # sqrt(2/pi)
    return 0.5 * x * (1.0 + jnp.tanh(c * (x + 0.044715 * x * x * x)))


def _stage_kernel(x_ref, masks_ref, w1c9_ref, w1z_ref, b1_ref, w2_ref, o_ref, xc9_ref,
                  *, depth, cpad, img_h, img_w):
    # x_ref:     (dim, HW)              one image, channels on sublanes, pixels on lanes
    # masks_ref: (9, 1, HW)             border masks for the 9 circular-roll taps
    # w1c9_ref:  (depth, hidden, 9*cpad) conv3x3 (+BN scale) folded into W1 conv columns
    # w1z_ref:   (depth, hidden, dim)   W1 (BN folded) with conv-channel columns zeroed
    # b1_ref:    (depth, hidden, 1)     folded BN bias
    # w2_ref:    (depth, dim, hidden)   W2 (layer_scale folded, if any)
    # xc9_ref:   (9*cpad, HW)           VMEM scratch holding the in-kernel im2col
    hw = img_h * img_w
    x = x_ref[...].astype(jnp.float32)                       # (dim, HW), lane axis = H*W
    for d in range(depth):                                   # static unroll over fused blocks
        # ---- partial 3x3 conv: in-kernel 9-tap im2col via circular rolls + border masks ----
        xc = x[:cpad, :]                                     # conv channels (sublane-aligned pad)
        for t in range(9):
            dy, dx = t // 3 - 1, t % 3 - 1
            off = dy * img_w + dx                            # flat pixel offset of tap (dy, dx)
            tap = xc if off == 0 else pltpu.roll(xc, (-off) % hw, 1)
            xc9_ref[t * cpad:(t + 1) * cpad, :] = tap * masks_ref[t]
        # ---- conv weights pre-folded into W1 -> single K = 9*cpad matmul; untouched channels
        #      go through W1 with the conv columns zeroed (no lane slicing / concat needed) ----
        h = (jnp.dot(w1c9_ref[d], xc9_ref[...], preferred_element_type=jnp.float32)
             + jnp.dot(w1z_ref[d], x, preferred_element_type=jnp.float32)
             + b1_ref[d])                                    # (hidden, HW)
        h = _gelu_tanh(h)
        y = jnp.dot(w2_ref[d], h, preferred_element_type=jnp.float32)   # (dim, HW)
        x = x + y                                            # residual (layer_scale is in W2)
    o_ref[...] = x.astype(o_ref.dtype)


@functools.partial(jax.jit, static_argnames=("n_div", "eps"))
def basic_stage_forward(x_nchw, blocks, n_div, eps=1e-5):
    """BasicStage.forward: all MLPBlocks fused in one pallas_call. NCHW in / NCHW out."""
    B, dim, H, W = x_nchw.shape
    HW = H * W
    Cc = dim // n_div
    depth = len(blocks)
    hidden = blocks[0]["w1"].shape[0]
    cpad = min(dim, _round_up(Cc, 8))        # sublane-aligned conv-channel slab (zero-padded W1)

    # ---- one-time parameter folds: BN -> W1/b1, conv3x3 -> W1 conv columns, layer_scale -> W2 ----
    w1c9_l, w1z_l, b1_l, w2_l = [], [], [], []
    for blk in blocks:
        scale = blk["bn_gamma"] / jnp.sqrt(blk["bn_var"] + eps)           # (hidden,)
        w1 = blk["w1"] * scale[:, None]                                   # (hidden, dim), BN folded
        b1 = (blk["bn_beta"] - blk["bn_mean"] * scale)[:, None]           # (hidden, 1)
        w1_c = w1[:, :Cc]                                                 # conv-channel columns
        taps_w = []
        for t in range(9):
            wt = jnp.dot(w1_c, blk["conv3_w"][:, :, t // 3, t % 3],
                         precision=lax.Precision.HIGHEST)                 # (hidden, Cc)
            if cpad > Cc:
                wt = jnp.pad(wt, ((0, 0), (0, cpad - Cc)))                # zero cols for pad chans
            taps_w.append(wt)
        w1c9 = jnp.concatenate(taps_w, axis=1)                            # (hidden, 9*cpad)
        w1z = w1.at[:, :Cc].set(0.0)                                      # untouched-channel path
        w2 = blk["w2"]                                                    # (dim, hidden)
        if blk.get("layer_scale", None) is not None:
            w2 = w2 * blk["layer_scale"][:, None]                         # fold layer_scale
        w1c9_l.append(w1c9); w1z_l.append(w1z); b1_l.append(b1); w2_l.append(w2)
    w1c9_all = jnp.stack(w1c9_l)            # (depth, hidden, 9*cpad)
    w1z_all = jnp.stack(w1z_l)              # (depth, hidden, dim)
    b1_all = jnp.stack(b1_l)                # (depth, hidden, 1)
    w2_all = jnp.stack(w2_l)                # (depth, dim, hidden)

    # ---- border masks for the 9 circular-roll taps (shared by every block & grid step) ----
    pos = jnp.arange(HW, dtype=jnp.int32)
    hh, ww = pos // W, pos % W
    mask_rows = []
    for t in range(9):
        dy, dx = t // 3 - 1, t % 3 - 1
        m = (hh + dy >= 0) & (hh + dy < H) & (ww + dx >= 0) & (ww + dx < W)
        mask_rows.append(m.astype(jnp.float32)[None, :])
    masks = jnp.stack(mask_rows)            # (9, 1, HW)

    x3 = x_nchw.reshape(B, dim, HW)         # lane-dense view; no transpose, no padding

    # right-sized VMEM request: double-buffered act tiles + resident weights + scratch + headroom
    act_bytes = 2 * 2 * dim * HW * 4
    const_bytes = 4 * (w1c9_all.size + w1z_all.size + b1_all.size + w2_all.size + masks.size)
    scr_bytes = 9 * cpad * HW * 4
    vmem_limit = int(max(2 * (act_bytes + 2 * const_bytes + scr_bytes), 4 * 1024 * 1024))

    flops = 2 * B * depth * HW * (hidden * 9 * cpad + hidden * dim + dim * hidden)
    bytes_accessed = 4 * (2 * B * dim * HW) + const_bytes

    kernel = functools.partial(_stage_kernel, depth=depth, cpad=cpad, img_h=H, img_w=W)
    out = pl.pallas_call(
        kernel,
        out_shape=jax.ShapeDtypeStruct((B, dim, HW), x_nchw.dtype),
        grid=(B,),
        in_specs=[
            pl.BlockSpec((None, dim, HW), lambda b: (b, 0, 0)),             # activations (1 image)
            pl.BlockSpec((9, 1, HW), lambda b: (0, 0, 0)),                  # tap border masks
            pl.BlockSpec((depth, hidden, 9 * cpad), lambda b: (0, 0, 0)),   # conv(+BN)-folded W1
            pl.BlockSpec((depth, hidden, dim), lambda b: (0, 0, 0)),        # W1, conv cols zeroed
            pl.BlockSpec((depth, hidden, 1), lambda b: (0, 0, 0)),          # folded BN bias
            pl.BlockSpec((depth, dim, hidden), lambda b: (0, 0, 0)),        # W2 (+layer_scale)
        ],
        out_specs=pl.BlockSpec((None, dim, HW), lambda b: (b, 0, 0)),
        scratch_shapes=[pltpu.VMEM((9 * cpad, HW), jnp.float32)],
        compiler_params=pltpu.CompilerParams(
            dimension_semantics=("parallel",),
            vmem_limit_bytes=vmem_limit,
        ),
        cost_estimate=pl.CostEstimate(
            flops=flops, transcendentals=B * depth * HW * hidden,
            bytes_accessed=bytes_accessed),
    )(x3, masks, w1c9_all, w1z_all, b1_all, w2_all)

    return out.reshape(B, dim, H, W)


def _reference(x_nchw, blocks, n_div, eps=1e-5):
    """Pure-JAX reference mirroring the PyTorch module (eval-mode BN, split_cat pconv)."""
    x = x_nchw
    for blk in blocks:
        _, dim, _, _ = x.shape
        Cc = dim // n_div
        shortcut = x
        x1, x2 = x[:, :Cc], x[:, Cc:]
        x1 = lax.conv_general_dilated(
            x1, blk["conv3_w"], window_strides=(1, 1), padding=((1, 1), (1, 1)),
            dimension_numbers=("NCHW", "OIHW", "NCHW"), precision=lax.Precision.HIGHEST)
        z = jnp.concatenate([x1, x2], axis=1)
        h = jnp.einsum("bchw,oc->bohw", z, blk["w1"], precision=lax.Precision.HIGHEST)
        scale = blk["bn_gamma"] / jnp.sqrt(blk["bn_var"] + eps)
        bias = blk["bn_beta"] - blk["bn_mean"] * scale
        h = h * scale[None, :, None, None] + bias[None, :, None, None]
        h = _gelu_tanh(h)
        y = jnp.einsum("bchw,oc->bohw", h, blk["w2"], precision=lax.Precision.HIGHEST)
        if blk.get("layer_scale", None) is not None:
            y = y * blk["layer_scale"][None, :, None, None]
        x = shortcut + y
    return x


if __name__ == "__main__":
    # BasicStage(dim=16, depth=2, n_div=4, mlp_ratio=2.0, layer_scale_init_value=0.0)
    # applied to input (B=2, C=16, H=16, W=16) in NCHW.
    B, dim, H, W = 2, 16, 16, 16
    depth, n_div, mlp_ratio = 2, 4, 2.0
    layer_scale_init_value = 0.0
    Cc = dim // n_div
    hidden = int(dim * mlp_ratio)

    key = jax.random.PRNGKey(0)
    key, kx = jax.random.split(key)
    x = jax.random.normal(kx, (B, dim, H, W), dtype=jnp.float32)

    blocks = []
    for _ in range(depth):
        key, k1, k2, k3, k4, k5, k6, k7 = jax.random.split(key, 8)
        blk = {
            "conv3_w": 0.1 * jax.random.normal(k1, (Cc, Cc, 3, 3), jnp.float32),
            "w1": 0.1 * jax.random.normal(k2, (hidden, dim), jnp.float32),
            "w2": 0.1 * jax.random.normal(k3, (dim, hidden), jnp.float32),
            "bn_gamma": 1.0 + 0.1 * jax.random.normal(k4, (hidden,), jnp.float32),
            "bn_beta": 0.1 * jax.random.normal(k5, (hidden,), jnp.float32),
            "bn_mean": 0.1 * jax.random.normal(k6, (hidden,), jnp.float32),
            "bn_var": 1.0 + 0.1 * jnp.abs(jax.random.normal(k7, (hidden,), jnp.float32)),
        }
        if layer_scale_init_value > 0:
            blk["layer_scale"] = layer_scale_init_value * jnp.ones((dim,), jnp.float32)
        blocks.append(blk)

    out = jax.block_until_ready(basic_stage_forward(x, blocks, n_div=n_div))
    ref = _reference(x, blocks, n_div=n_div)

    assert out.shape == (B, dim, H, W), out.shape
    max_err = float(jnp.max(jnp.abs(out - ref)))
    assert jnp.allclose(out, ref, atol=1e-3, rtol=1e-3), max_err

    print("KERNEL_OK")
</pallas_src>

<mosaic_0001>
module attributes {stable_mosaic.version = 11 : i64} {
  func.func @_stage_kernel(%arg0: i32, %arg1: memref<1x16x256xf32, #tpu.memory_space<vmem>>, %arg2: memref<9x1x256xf32, #tpu.memory_space<vmem>>, %arg3: memref<2x32x72xf32, #tpu.memory_space<vmem>>, %arg4: memref<2x32x16xf32, #tpu.memory_space<vmem>>, %arg5: memref<2x32x1xf32, #tpu.memory_space<vmem>>, %arg6: memref<2x16x32xf32, #tpu.memory_space<vmem>>, %arg7: memref<1x16x256xf32, #tpu.memory_space<vmem>>, %arg8: memref<72x256xf32, #tpu.memory_space<vmem>>) attributes {dimension_semantics = [#tpu.dimension_semantics<parallel>], iteration_bounds = array<i64: 2>, scalar_prefetch = 0 : i64, scratch_operands = 1 : i64, tpu.core_type = #tpu.core_type<tc>, window_params = [{transform_indices = @transform_0, window_bounds = array<i64: 1, 16, 256>}, {pipeline_mode = #tpu.pipeline_mode<synchronous>, transform_indices = @transform_1, window_bounds = array<i64: 9, 1, 256>}, {pipeline_mode = #tpu.pipeline_mode<synchronous>, transform_indices = @transform_2, window_bounds = array<i64: 2, 32, 72>}, {pipeline_mode = #tpu.pipeline_mode<synchronous>, transform_indices = @transform_3, window_bounds = array<i64: 2, 32, 16>}, {pipeline_mode = #tpu.pipeline_mode<synchronous>, transform_indices = @transform_4, window_bounds = array<i64: 2, 32, 1>}, {pipeline_mode = #tpu.pipeline_mode<synchronous>, transform_indices = @transform_5, window_bounds = array<i64: 2, 16, 32>}, {transform_indices = @transform_6, window_bounds = array<i64: 1, 16, 256>}]} {
    %c0 = arith.constant 0 : index
    %c0_0 = arith.constant 0 : index
    %c0_1 = arith.constant 0 : index
    %0 = vector.load %arg1[%c0, %c0_0, %c0_1] : memref<1x16x256xf32, #tpu.memory_space<vmem>>, vector<1x16x256xf32>
    %1 = vector.shape_cast %0 : vector<1x16x256xf32> to vector<16x256xf32>
    %2 = vector.extract_strided_slice %1 {offsets = [0, 0], sizes = [8, 256], strides = [1, 1]} : vector<16x256xf32> to vector<8x256xf32>
    %c17_i32 = arith.constant 17 : i32
    %3 = tpu.dynamic_rotate %2 by %c17_i32 dim 1 : vector<8x256xf32>, i32 -> vector<8x256xf32>
    %c0_2 = arith.constant 0 : index
    %c0_3 = arith.constant 0 : index
    %c0_4 = arith.constant 0 : index
    %4 = vector.load %arg2[%c0_2, %c0_3, %c0_4] : memref<9x1x256xf32, #tpu.memory_space<vmem>>, vector<1x1x256xf32>
    %5 = vector.shape_cast %4 : vector<1x1x256xf32> to vector<1x256xf32>
    %6 = vector.broadcast %5 : vector<1x256xf32> to vector<8x256xf32>
    %7 = arith.mulf %3, %6 : vector<8x256xf32>
    %c0_5 = arith.constant 0 : index
    %c0_6 = arith.constant 0 : index
    %8 = vector.load %arg8[%c0_5, %c0_6] : memref<72x256xf32, #tpu.memory_space<vmem>>, vector<8x256xf32>
    tpu.vector_store %arg8[%c0_5, %c0_6], %7 {strides = array<i32>} : memref<72x256xf32, #tpu.memory_space<vmem>>, vector<8x256xf32>,
    %c16_i32 = arith.constant 16 : i32
    %9 = tpu.dynamic_rotate %2 by %c16_i32 dim 1 : vector<8x256xf32>, i32 -> vector<8x256xf32>
    %c1 = arith.constant 1 : index
    %c0_7 = arith.constant 0 : index
    %c0_8 = arith.constant 0 : index
    %10 = vector.load %arg2[%c1, %c0_7, %c0_8] : memref<9x1x256xf32, #tpu.memory_space<vmem>>, vector<1x1x256xf32>
    %11 = vector.shape_cast %10 : vector<1x1x256xf32> to vector<1x256xf32>
    %12 = vector.broadcast %11 : vector<1x256xf32> to vector<8x256xf32>
    %13 = arith.mulf %9, %12 : vector<8x256xf32>
    %c8 = arith.constant 8 : index
    %c0_9 = arith.constant 0 : index
    %14 = vector.load %arg8[%c8, %c0_9] : memref<72x256xf32, #tpu.memory_space<vmem>>, vector<8x256xf32>
    tpu.vector_store %arg8[%c8, %c0_9], %13 {strides = array<i32>} : memref<72x256xf32, #tpu.memory_space<vmem>>, vector<8x256xf32>,
    %c15_i32 = arith.constant 15 : i32
    %15 = tpu.dynamic_rotate %2 by %c15_i32 dim 1 : vector<8x256xf32>, i32 -> vector<8x256xf32>
    %c2 = arith.constant 2 : index
    %c0_10 = arith.constant 0 : index
    %c0_11 = arith.constant 0 : index
    %16 = vector.load %arg2[%c2, %c0_10, %c0_11] : memref<9x1x256xf32, #tpu.memory_space<vmem>>, vector<1x1x256xf32>
    %17 = vector.shape_cast %16 : vector<1x1x256xf32> to vector<1x256xf32>
    %18 = vector.broadcast %17 : vector<1x256xf32> to vector<8x256xf32>
    %19 = arith.mulf %15, %18 : vector<8x256xf32>
    %c16 = arith.constant 16 : index
    %c0_12 = arith.constant 0 : index
    %20 = vector.load %arg8[%c16, %c0_12] : memref<72x256xf32, #tpu.memory_space<vmem>>, vector<8x256xf32>
    tpu.vector_store %arg8[%c16, %c0_12], %19 {strides = array<i32>} : memref<72x256xf32, #tpu.memory_space<vmem>>, vector<8x256xf32>,
    %c1_i32 = arith.constant 1 : i32
    %21 = tpu.dynamic_rotate %2 by %c1_i32 dim 1 : vector<8x256xf32>, i32 -> vector<8x256xf32>
    %c3 = arith.constant 3 : index
    %c0_13 = arith.constant 0 : index
    %c0_14 = arith.constant 0 : index
    %22 = vector.load %arg2[%c3, %c0_13, %c0_14] : memref<9x1x256xf32, #tpu.memory_space<vmem>>, vector<1x1x256xf32>
    %23 = vector.shape_cast %22 : vector<1x1x256xf32> to vector<1x256xf32>
    %24 = vector.broadcast %23 : vector<1x256xf32> to vector<8x256xf32>
    %25 = arith.mulf %21, %24 : vector<8x256xf32>
    %c24 = arith.constant 24 : index
    %c0_15 = arith.constant 0 : index
    %26 = vector.load %arg8[%c24, %c0_15] : memref<72x256xf32, #tpu.memory_space<vmem>>, vector<8x256xf32>
    tpu.vector_store %arg8[%c24, %c0_15], %25 {strides = array<i32>} : memref<72x256xf32, #tpu.memory_space<vmem>>, vector<8x256xf32>,
    %c4 = arith.constant 4 : index
    %c0_16 = arith.constant 0 : index
    %c0_17 = arith.constant 0 : index
    %27 = vector.load %arg2[%c4, %c0_16, %c0_17] : memref<9x1x256xf32, #tpu.memory_space<vmem>>, vector<1x1x256xf32>
    %28 = vector.shape_cast %27 : vector<1x1x256xf32> to vector<1x256xf32>
    %29 = vector.broadcast %28 : vector<1x256xf32> to vector<8x256xf32>
    %30 = arith.mulf %2, %29 : vector<8x256xf32>
    %c32 = arith.constant 32 : index
    %c0_18 = arith.constant 0 : index
    %31 = vector.load %arg8[%c32, %c0_18] : memref<72x256xf32, #tpu.memory_space<vmem>>, vector<8x256xf32>
    tpu.vector_store %arg8[%c32, %c0_18], %30 {strides = array<i32>} : memref<72x256xf32, #tpu.memory_space<vmem>>, vector<8x256xf32>,
    %c255_i32 = arith.constant 255 : i32
    %32 = tpu.dynamic_rotate %2 by %c255_i32 dim 1 : vector<8x256xf32>, i32 -> vector<8x256xf32>
    %c5 = arith.constant 5 : index
    %c0_19 = arith.constant 0 : index
    %c0_20 = arith.constant 0 : index
    %33 = vector.load %arg2[%c5, %c0_19, %c0_20] : memref<9x1x256xf32, #tpu.memory_space<vmem>>, vector<1x1x256xf32>
    %34 = vector.shape_cast %33 : vector<1x1x256xf32> to vector<1x256xf32>
    %35 = vector.broadcast %34 : vector<1x256xf32> to vector<8x256xf32>
    %36 = arith.mulf %32, %35 : vector<8x256xf32>
    %c40 = arith.constant 40 : index
    %c0_21 = arith.constant 0 : index
    %37 = vector.load %arg8[%c40, %c0_21] : memref<72x256xf32, #tpu.memory_space<vmem>>, vector<8x256xf32>
    tpu.vector_store %arg8[%c40, %c0_21], %36 {strides = array<i32>} : memref<72x256xf32, #tpu.memory_space<vmem>>, vector<8x256xf32>,
    %c241_i32 = arith.constant 241 : i32
    %38 = tpu.dynamic_rotate %2 by %c241_i32 dim 1 : vector<8x256xf32>, i32 -> vector<8x256xf32>
    %c6 = arith.constant 6 : index
    %c0_22 = arith.constant 0 : index
    %c0_23 = arith.constant 0 : index
    %39 = vector.load %arg2[%c6, %c0_22, %c0_23] : memref<9x1x256xf32, #tpu.memory_space<vmem>>, vector<1x1x256xf32>
    %40 = vector.shape_cast %39 : vector<1x1x256xf32> to vector<1x256xf32>
    %41 = vector.broadcast %40 : vector<1x256xf32> to vector<8x256xf32>
    %42 = arith.mulf %38, %41 : vector<8x256xf32>
    %c48 = arith.constant 48 : index
    %c0_24 = arith.constant 0 : index
    %43 = vector.load %arg8[%c48, %c0_24] : memref<72x256xf32, #tpu.memory_space<vmem>>, vector<8x256xf32>
    tpu.vector_store %arg8[%c48, %c0_24], %42 {strides = array<i32>} : memref<72x256xf32, #tpu.memory_space<vmem>>, vector<8x256xf32>,
    %c240_i32 = arith.constant 240 : i32
    %44 = tpu.dynamic_rotate %2 by %c240_i32 dim 1 : vector<8x256xf32>, i32 -> vector<8x256xf32>
    %c7 = arith.constant 7 : index
    %c0_25 = arith.constant 0 : index
    %c0_26 = arith.constant 0 : index
    %45 = vector.load %arg2[%c7, %c0_25, %c0_26] : memref<9x1x256xf32, #tpu.memory_space<vmem>>, vector<1x1x256xf32>
    %46 = vector.shape_cast %45 : vector<1x1x256xf32> to vector<1x256xf32>
    %47 = vector.broadcast %46 : vector<1x256xf32> to vector<8x256xf32>
    %48 = arith.mulf %44, %47 : vector<8x256xf32>
    %c56 = arith.constant 56 : index
    %c0_27 = arith.constant 0 : index
    %49 = vector.load %arg8[%c56, %c0_27] : memref<72x256xf32, #tpu.memory_space<vmem>>, vector<8x256xf32>
    tpu.vector_store %arg8[%c56, %c0_27], %48 {strides = array<i32>} : memref<72x256xf32, #tpu.memory_space<vmem>>, vector<8x256xf32>,
    %c239_i32 = arith.constant 239 : i32
    %50 = tpu.dynamic_rotate %2 by %c239_i32 dim 1 : vector<8x256xf32>, i32 -> vector<8x256xf32>
    %c8_28 = arith.constant 8 : index
    %c0_29 = arith.constant 0 : index
    %c0_30 = arith.constant 0 : index
    %51 = vector.load %arg2[%c8_28, %c0_29, %c0_30] : memref<9x1x256xf32, #tpu.memory_space<vmem>>, vector<1x1x256xf32>
    %52 = vector.shape_cast %51 : vector<1x1x256xf32> to vector<1x256xf32>
    %53 = vector.broadcast %52 : vector<1x256xf32> to vector<8x256xf32>
    %54 = arith.mulf %50, %53 : vector<8x256xf32>
    %c64 = arith.constant 64 : index
    %c0_31 = arith.constant 0 : index
    %55 = vector.load %arg8[%c64, %c0_31] : memref<72x256xf32, #tpu.memory_space<vmem>>, vector<8x256xf32>
    tpu.vector_store %arg8[%c64, %c0_31], %54 {strides = array<i32>} : memref<72x256xf32, #tpu.memory_space<vmem>>, vector<8x256xf32>,
    %c0_32 = arith.constant 0 : index
    %c0_33 = arith.constant 0 : index
    %c0_34 = arith.constant 0 : index
    %56 = vector.load %arg3[%c0_32, %c0_33, %c0_34] : memref<2x32x72xf32, #tpu.memory_space<vmem>>, vector<1x32x72xf32>
    %57 = vector.shape_cast %56 : vector<1x32x72xf32> to vector<32x72xf32>
    %c0_35 = arith.constant 0 : index
    %c0_36 = arith.constant 0 : index
    %58 = vector.load %arg8[%c0_35, %c0_36] : memref<72x256xf32, #tpu.memory_space<vmem>>, vector<72x256xf32>
    %cst = arith.constant dense<0.000000e+00> : vector<32x256xf32>
    %59 = tpu.matmul %57, %58, %cst {dimension_numbers = #tpu.dot_dimension_numbers<[1], [0], [0], [1], [0, 0, 1, 1], [], []>} : vector<32x72xf32>, vector<72x256xf32>, vector<32x256xf32> -> vector<32x256xf32>
    %c0_37 = arith.constant 0 : index
    %c0_38 = arith.constant 0 : index
    %c0_39 = arith.constant 0 : index
    %60 = vector.load %arg4[%c0_37, %c0_38, %c0_39] : memref<2x32x16xf32, #tpu.memory_space<vmem>>, vector<1x32x16xf32>
    %61 = vector.shape_cast %60 : vector<1x32x16xf32> to vector<32x16xf32>
    %cst_40 = arith.constant dense<0.000000e+00> : vector<32x256xf32>
    %62 = tpu.matmul %61, %1, %cst_40 {dimension_numbers = #tpu.dot_dimension_numbers<[1], [0], [0], [1], [0, 0, 1, 1], [], []>} : vector<32x16xf32>, vector<16x256xf32>, vector<32x256xf32> -> vector<32x256xf32>
    %63 = arith.addf %59, %62 : vector<32x256xf32>
    %c0_41 = arith.constant 0 : index
    %c0_42 = arith.constant 0 : index
    %c0_43 = arith.constant 0 : index
    %64 = vector.load %arg5[%c0_41, %c0_42, %c0_43] : memref<2x32x1xf32, #tpu.memory_space<vmem>>, vector<1x32x1xf32>
    %65 = vector.shape_cast %64 : vector<1x32x1xf32> to vector<32x1xf32>
    %66 = vector.broadcast %65 : vector<32x1xf32> to vector<32x256xf32>
    %67 = arith.addf %63, %66 : vector<32x256xf32>
    %cst_44 = arith.constant 5.000000e-01 : f32
    %68 = vector.broadcast %cst_44 : f32 to vector<32x256xf32>
    %69 = arith.mulf %68, %67 : vector<32x256xf32>
    %cst_45 = arith.constant 4.471500e-02 : f32
    %70 = vector.broadcast %cst_45 : f32 to vector<32x256xf32>
    %71 = arith.mulf %70, %67 : vector<32x256xf32>
    %72 = arith.mulf %71, %67 : vector<32x256xf32>
    %73 = arith.mulf %72, %67 : vector<32x256xf32>
    %74 = arith.addf %67, %73 : vector<32x256xf32>
    %cst_46 = arith.constant 0.797884583 : f32
    %75 = vector.broadcast %cst_46 : f32 to vector<32x256xf32>
    %76 = arith.mulf %75, %74 : vector<32x256xf32>
    %77 = math.tanh %76 : vector<32x256xf32>
    %cst_47 = arith.constant 1.000000e+00 : f32
    %78 = vector.broadcast %cst_47 : f32 to vector<32x256xf32>
    %79 = arith.addf %78, %77 : vector<32x256xf32>
    %80 = arith.mulf %69, %79 : vector<32x256xf32>
    %c0_48 = arith.constant 0 : index
    %c0_49 = arith.constant 0 : index
    %c0_50 = arith.constant 0 : index
    %81 = vector.load %arg6[%c0_48, %c0_49, %c0_50] : memref<2x16x32xf32, #tpu.memory_space<vmem>>, vector<1x16x32xf32>
    %82 = vector.shape_cast %81 : vector<1x16x32xf32> to vector<16x32xf32>
    %cst_51 = arith.constant dense<0.000000e+00> : vector<16x256xf32>
    %83 = tpu.matmul %82, %80, %cst_51 {dimension_numbers = #tpu.dot_dimension_numbers<[1], [0], [0], [1], [0, 0, 1, 1], [], []>} : vector<16x32xf32>, vector<32x256xf32>, vector<16x256xf32> -> vector<16x256xf32>
    %84 = arith.addf %1, %83 : vector<16x256xf32>
    %85 = vector.extract_strided_slice %84 {offsets = [0, 0], sizes = [8, 256], strides = [1, 1]} : vector<16x256xf32> to vector<8x256xf32>
    %c17_i32_52 = arith.constant 17 : i32
    %86 = tpu.dynamic_rotate %85 by %c17_i32_52 dim 1 : vector<8x256xf32>, i32 -> vector<8x256xf32>
    %c0_53 = arith.constant 0 : index
    %c0_54 = arith.constant 0 : index
    %c0_55 = arith.constant 0 : index
    %87 = vector.load %arg2[%c0_53, %c0_54, %c0_55] : memref<9x1x256xf32, #tpu.memory_space<vmem>>, vector<1x1x256xf32>
    %88 = vector.shape_cast %87 : vector<1x1x256xf32> to vector<1x256xf32>
    %89 = vector.broadcast %88 : vector<1x256xf32> to vector<8x256xf32>
    %90 = arith.mulf %86, %89 : vector<8x256xf32>
    %c0_56 = arith.constant 0 : index
    %c0_57 = arith.constant 0 : index
    %91 = vector.load %arg8[%c0_56, %c0_57] : memref<72x256xf32, #tpu.memory_space<vmem>>, vector<8x256xf32>
    tpu.vector_store %arg8[%c0_56, %c0_57], %90 {strides = array<i32>} : memref<72x256xf32, #tpu.memory_space<vmem>>, vector<8x256xf32>,
    %c16_i32_58 = arith.constant 16 : i32
    %92 = tpu.dynamic_rotate %85 by %c16_i32_58 dim 1 : vector<8x256xf32>, i32 -> vector<8x256xf32>
    %c1_59 = arith.constant 1 : index
    %c0_60 = arith.constant 0 : index
    %c0_61 = arith.constant 0 : index
    %93 = vector.load %arg2[%c1_59, %c0_60, %c0_61] : memref<9x1x256xf32, #tpu.memory_space<vmem>>, vector<1x1x256xf32>
    %94 = vector.shape_cast %93 : vector<1x1x256xf32> to vector<1x256xf32>
    %95 = vector.broadcast %94 : vector<1x256xf32> to vector<8x256xf32>
    %96 = arith.mulf %92, %95 : vector<8x256xf32>
    %c8_62 = arith.constant 8 : index
    %c0_63 = arith.constant 0 : index
    %97 = vector.load %arg8[%c8_62, %c0_63] : memref<72x256xf32, #tpu.memory_space<vmem>>, vector<8x256xf32>
    tpu.vector_store %arg8[%c8_62, %c0_63], %96 {strides = array<i32>} : memref<72x256xf32, #tpu.memory_space<vmem>>, vector<8x256xf32>,
    %c15_i32_64 = arith.constant 15 : i32
    %98 = tpu.dynamic_rotate %85 by %c15_i32_64 dim 1 : vector<8x256xf32>, i32 -> vector<8x256xf32>
    %c2_65 = arith.constant 2 : index
    %c0_66 = arith.constant 0 : index
    %c0_67 = arith.constant 0 : index
    %99 = vector.load %arg2[%c2_65, %c0_66, %c0_67] : memref<9x1x256xf32, #tpu.memory_space<vmem>>, vector<1x1x256xf32>
    %100 = vector.shape_cast %99 : vector<1x1x256xf32> to vector<1x256xf32>
    %101 = vector.broadcast %100 : vector<1x256xf32> to vector<8x256xf32>
    %102 = arith.mulf %98, %101 : vector<8x256xf32>
    %c16_68 = arith.constant 16 : index
    %c0_69 = arith.constant 0 : index
    %103 = vector.load %arg8[%c16_68, %c0_69] : memref<72x256xf32, #tpu.memory_space<vmem>>, vector<8x256xf32>
    tpu.vector_store %arg8[%c16_68, %c0_69], %102 {strides = array<i32>} : memref<72x256xf32, #tpu.memory_space<vmem>>, vector<8x256xf32>,
    %c1_i32_70 = arith.constant 1 : i32
    %104 = tpu.dynamic_rotate %85 by %c1_i32_70 dim 1 : vector<8x256xf32>, i32 -> vector<8x256xf32>
    %c3_71 = arith.constant 3 : index
    %c0_72 = arith.constant 0 : index
    %c0_73 = arith.constant 0 : index
    %105 = vector.load %arg2[%c3_71, %c0_72, %c0_73] : memref<9x1x256xf32, #tpu.memory_space<vmem>>, vector<1x1x256xf32>
    %106 = vector.shape_cast %105 : vector<1x1x256xf32> to vector<1x256xf32>
    %107 = vector.broadcast %106 : vector<1x256xf32> to vector<8x256xf32>
    %108 = arith.mulf %104, %107 : vector<8x256xf32>
    %c24_74 = arith.constant 24 : index
    %c0_75 = arith.constant 0 : index
    %109 = vector.load %arg8[%c24_74, %c0_75] : memref<72x256xf32, #tpu.memory_space<vmem>>, vector<8x256xf32>
    tpu.vector_store %arg8[%c24_74, %c0_75], %108 {strides = array<i32>} : memref<72x256xf32, #tpu.memory_space<vmem>>, vector<8x256xf32>,
    %c4_76 = arith.constant 4 : index
    %c0_77 = arith.constant 0 : index
    %c0_78 = arith.constant 0 : index
    %110 = vector.load %arg2[%c4_76, %c0_77, %c0_78] : memref<9x1x256xf32, #tpu.memory_space<vmem>>, vector<1x1x256xf32>
    %111 = vector.shape_cast %110 : vector<1x1x256xf32> to vector<1x256xf32>
    %112 = vector.broadcast %111 : vector<1x256xf32> to vector<8x256xf32>
    %113 = arith.mulf %85, %112 : vector<8x256xf32>
    %c32_79 = arith.constant 32 : index
    %c0_80 = arith.constant 0 : index
    %114 = vector.load %arg8[%c32_79, %c0_80] : memref<72x256xf32, #tpu.memory_space<vmem>>, vector<8x256xf32>
    tpu.vector_store %arg8[%c32_79, %c0_80], %113 {strides = array<i32>} : memref<72x256xf32, #tpu.memory_space<vmem>>, vector<8x256xf32>,
    %c255_i32_81 = arith.constant 255 : i32
    %115 = tpu.dynamic_rotate %85 by %c255_i32_81 dim 1 : vector<8x256xf32>, i32 -> vector<8x256xf32>
    %c5_82 = arith.constant 5 : index
    %c0_83 = arith.constant 0 : index
    %c0_84 = arith.constant 0 : index
    %116 = vector.load %arg2[%c5_82, %c0_83, %c0_84] : memref<9x1x256xf32, #tpu.memory_space<vmem>>, vector<1x1x256xf32>
    %117 = vector.shape_cast %116 : vector<1x1x256xf32> to vector<1x256xf32>
    %118 = vector.broadcast %117 : vector<1x256xf32> to vector<8x256xf32>
    %119 = arith.mulf %115, %118 : vector<8x256xf32>
    %c40_85 = arith.constant 40 : index
    %c0_86 = arith.constant 0 : index
    %120 = vector.load %arg8[%c40_85, %c0_86] : memref<72x256xf32, #tpu.memory_space<vmem>>, vector<8x256xf32>
    tpu.vector_store %arg8[%c40_85, %c0_86], %119 {strides = array<i32>} : memref<72x256xf32, #tpu.memory_space<vmem>>, vector<8x256xf32>,
    %c241_i32_87 = arith.constant 241 : i32
    %121 = tpu.dynamic_rotate %85 by %c241_i32_87 dim 1 : vector<8x256xf32>, i32 -> vector<8x256xf32>
    %c6_88 = arith.constant 6 : index
    %c0_89 = arith.constant 0 : index
    %c0_90 = arith.constant 0 : index
    %122 = vector.load %arg2[%c6_88, %c0_89, %c0_90] : memref<9x1x256xf32, #tpu.memory_space<vmem>>, vector<1x1x256xf32>
    %123 = vector.shape_cast %122 : vector<1x1x256xf32> to vector<1x256xf32>
    %124 = vector.broadcast %123 : vector<1x256xf32> to vector<8x256xf32>
    %125 = arith.mulf %121, %124 : vector<8x256xf32>
    %c48_91 = arith.constant 48 : index
    %c0_92 = arith.constant 0 : index
    %126 = vector.load %arg8[%c48_91, %c0_92] : memref<72x256xf32, #tpu.memory_space<vmem>>, vector<8x256xf32>
    tpu.vector_store %arg8[%c48_91, %c0_92], %125 {strides = array<i32>} : memref<72x256xf32, #tpu.memory_space<vmem>>, vector<8x256xf32>,
    %c240_i32_93 = arith.constant 240 : i32
    %127 = tpu.dynamic_rotate %85 by %c240_i32_93 dim 1 : vector<8x256xf32>, i32 -> vector<8x256xf32>
    %c7_94 = arith.constant 7 : index
    %c0_95 = arith.constant 0 : index
    %c0_96 = arith.constant 0 : index
    %128 = vector.load %arg2[%c7_94, %c0_95, %c0_96] : memref<9x1x256xf32, #tpu.memory_space<vmem>>, vector<1x1x256xf32>
    %129 = vector.shape_cast %128 : vector<1x1x256xf32> to vector<1x256xf32>
    %130 = vector.broadcast %129 : vector<1x256xf32> to vector<8x256xf32>
    %131 = arith.mulf %127, %130 : vector<8x256xf32>
    %c56_97 = arith.constant 56 : index
    %c0_98 = arith.constant 0 : index
    %132 = vector.load %arg8[%c56_97, %c0_98] : memref<72x256xf32, #tpu.memory_space<vmem>>, vector<8x256xf32>
    tpu.vector_store %arg8[%c56_97, %c0_98], %131 {strides = array<i32>} : memref<72x256xf32, #tpu.memory_space<vmem>>, vector<8x256xf32>,
    %c239_i32_99 = arith.constant 239 : i32
    %133 = tpu.dynamic_rotate %85 by %c239_i32_99 dim 1 : vector<8x256xf32>, i32 -> vector<8x256xf32>
    %c8_100 = arith.constant 8 : index
    %c0_101 = arith.constant 0 : index
    %c0_102 = arith.constant 0 : index
    %134 = vector.load %arg2[%c8_100, %c0_101, %c0_102] : memref<9x1x256xf32, #tpu.memory_space<vmem>>, vector<1x1x256xf32>
    %135 = vector.shape_cast %134 : vector<1x1x256xf32> to vector<1x256xf32>
    %136 = vector.broadcast %135 : vector<1x256xf32> to vector<8x256xf32>
    %137 = arith.mulf %133, %136 : vector<8x256xf32>
    %c64_103 = arith.constant 64 : index
    %c0_104 = arith.constant 0 : index
    %138 = vector.load %arg8[%c64_103, %c0_104] : memref<72x256xf32, #tpu.memory_space<vmem>>, vector<8x256xf32>
    tpu.vector_store %arg8[%c64_103, %c0_104], %137 {strides = array<i32>} : memref<72x256xf32, #tpu.memory_space<vmem>>, vector<8x256xf32>,
    %c1_105 = arith.constant 1 : index
    %c0_106 = arith.constant 0 : index
    %c0_107 = arith.constant 0 : index
    %139 = vector.load %arg3[%c1_105, %c0_106, %c0_107] : memref<2x32x72xf32, #tpu.memory_space<vmem>>, vector<1x32x72xf32>
    %140 = vector.shape_cast %139 : vector<1x32x72xf32> to vector<32x72xf32>
    %c0_108 = arith.constant 0 : index
    %c0_109 = arith.constant 0 : index
    %141 = vector.load %arg8[%c0_108, %c0_109] : memref<72x256xf32, #tpu.memory_space<vmem>>, vector<72x256xf32>
    %cst_110 = arith.constant dense<0.000000e+00> : vector<32x256xf32>
    %142 = tpu.matmul %140, %141, %cst_110 {dimension_numbers = #tpu.dot_dimension_numbers<[1], [0], [0], [1], [0, 0, 1, 1], [], []>} : vector<32x72xf32>, vector<72x256xf32>, vector<32x256xf32> -> vector<32x256xf32>
    %c1_111 = arith.constant 1 : index
    %c0_112 = arith.constant 0 : index
    %c0_113 = arith.constant 0 : index
    %143 = vector.load %arg4[%c1_111, %c0_112, %c0_113] : memref<2x32x16xf32, #tpu.memory_space<vmem>>, vector<1x32x16xf32>
    %144 = vector.shape_cast %143 : vector<1x32x16xf32> to vector<32x16xf32>
    %cst_114 = arith.constant dense<0.000000e+00> : vector<32x256xf32>
    %145 = tpu.matmul %144, %84, %cst_114 {dimension_numbers = #tpu.dot_dimension_numbers<[1], [0], [0], [1], [0, 0, 1, 1], [], []>} : vector<32x16xf32>, vector<16x256xf32>, vector<32x256xf32> -> vector<32x256xf32>
    %146 = arith.addf %142, %145 : vector<32x256xf32>
    %c1_115 = arith.constant 1 : index
    %c0_116 = arith.constant 0 : index
    %c0_117 = arith.constant 0 : index
    %147 = vector.load %arg5[%c1_115, %c0_116, %c0_117] : memref<2x32x1xf32, #tpu.memory_space<vmem>>, vector<1x32x1xf32>
    %148 = vector.shape_cast %147 : vector<1x32x1xf32> to vector<32x1xf32>
    %149 = vector.broadcast %148 : vector<32x1xf32> to vector<32x256xf32>
    %150 = arith.addf %146, %149 : vector<32x256xf32>
    %cst_118 = arith.constant 5.000000e-01 : f32
    %151 = vector.broadcast %cst_118 : f32 to vector<32x256xf32>
    %152 = arith.mulf %151, %150 : vector<32x256xf32>
    %cst_119 = arith.constant 4.471500e-02 : f32
    %153 = vector.broadcast %cst_119 : f32 to vector<32x256xf32>
    %154 = arith.mulf %153, %150 : vector<32x256xf32>
    %155 = arith.mulf %154, %150 : vector<32x256xf32>
    %156 = arith.mulf %155, %150 : vector<32x256xf32>
    %157 = arith.addf %150, %156 : vector<32x256xf32>
    %cst_120 = arith.constant 0.797884583 : f32
    %158 = vector.broadcast %cst_120 : f32 to vector<32x256xf32>
    %159 = arith.mulf %158, %157 : vector<32x256xf32>
    %160 = math.tanh %159 : vector<32x256xf32>
    %cst_121 = arith.constant 1.000000e+00 : f32
    %161 = vector.broadcast %cst_121 : f32 to vector<32x256xf32>
    %162 = arith.addf %161, %160 : vector<32x256xf32>
    %163 = arith.mulf %152, %162 : vector<32x256xf32>
    %c1_122 = arith.constant 1 : index
    %c0_123 = arith.constant 0 : index
    %c0_124 = arith.constant 0 : index
    %164 = vector.load %arg6[%c1_122, %c0_123, %c0_124] : memref<2x16x32xf32, #tpu.memory_space<vmem>>, vector<1x16x32xf32>
    %165 = vector.shape_cast %164 : vector<1x16x32xf32> to vector<16x32xf32>
    %cst_125 = arith.constant dense<0.000000e+00> : vector<16x256xf32>
    %166 = tpu.matmul %165, %163, %cst_125 {dimension_numbers = #tpu.dot_dimension_numbers<[1], [0], [0], [1], [0, 0, 1, 1], [], []>} : vector<16x32xf32>, vector<32x256xf32>, vector<16x256xf32> -> vector<16x256xf32>
    %167 = arith.addf %84, %166 : vector<16x256xf32>
    %c0_126 = arith.constant 0 : index
    %c0_127 = arith.constant 0 : index
    %c0_128 = arith.constant 0 : index
    %168 = vector.load %arg7[%c0_126, %c0_127, %c0_128] : memref<1x16x256xf32, #tpu.memory_space<vmem>>, vector<1x16x256xf32>
    %169 = vector.shape_cast %168 : vector<1x16x256xf32> to vector<16x256xf32>
    %170 = vector.shape_cast %167 : vector<16x256xf32> to vector<1x16x256xf32>
    tpu.vector_store %arg7[%c0_126, %c0_127, %c0_128], %170 {strides = array<i32>} : memref<1x16x256xf32, #tpu.memory_space<vmem>>, vector<1x16x256xf32>,
    return
  }
  func.func @transform_0(%arg0: i32) -> (i32, i32, i32) {
    %c0_i32 = arith.constant 0 : i32
    %c0_i32_0 = arith.constant 0 : i32
    %c0_i32_1 = arith.constant 0 : i32
    return %arg0, %c0_i32, %c0_i32_0 : i32, i32, i32
  }
  func.func @transform_1(%arg0: i32) -> (i32, i32, i32) {
    %c0_i32 = arith.constant 0 : i32
    %c0_i32_0 = arith.constant 0 : i32
    %c0_i32_1 = arith.constant 0 : i32
    %c0_i32_2 = arith.constant 0 : i32
    return %c0_i32, %c0_i32_0, %c0_i32_1 : i32, i32, i32
  }
  func.func @transform_2(%arg0: i32) -> (i32, i32, i32) {
    %c0_i32 = arith.constant 0 : i32
    %c0_i32_0 = arith.constant 0 : i32
    %c0_i32_1 = arith.constant 0 : i32
    %c0_i32_2 = arith.constant 0 : i32
    return %c0_i32, %c0_i32_0, %c0_i32_1 : i32, i32, i32
  }
  func.func @transform_3(%arg0: i32) -> (i32, i32, i32) {
    %c0_i32 = arith.constant 0 : i32
    %c0_i32_0 = arith.constant 0 : i32
    %c0_i32_1 = arith.constant 0 : i32
    %c0_i32_2 = arith.constant 0 : i32
    return %c0_i32, %c0_i32_0, %c0_i32_1 : i32, i32, i32
  }
  func.func @transform_4(%arg0: i32) -> (i32, i32, i32) {
    %c0_i32 = arith.constant 0 : i32
    %c0_i32_0 = arith.constant 0 : i32
    %c0_i32_1 = arith.constant 0 : i32
    %c0_i32_2 = arith.constant 0 : i32
    return %c0_i32, %c0_i32_0, %c0_i32_1 : i32, i32, i32
  }
  func.func @transform_5(%arg0: i32) -> (i32, i32, i32) {
    %c0_i32 = arith.constant 0 : i32
    %c0_i32_0 = arith.constant 0 : i32
    %c0_i32_1 = arith.constant 0 : i32
    %c0_i32_2 = arith.constant 0 : i32
    return %c0_i32, %c0_i32_0, %c0_i32_1 : i32, i32, i32
  }
  func.func @transform_6(%arg0: i32) -> (i32, i32, i32) {
    %c0_i32 = arith.constant 0 : i32
    %c0_i32_0 = arith.constant 0 : i32
    %c0_i32_1 = arith.constant 0 : i32
    return %arg0, %c0_i32, %c0_i32_0 : i32, i32, i32
  }
}

</mosaic_0001>

<llo_original>
// kernel: basic_stage_forward.1
$region0: #{basic_stage_forward.1}
  #allocation0 [shape = 'u32[]', space=smem, size = 0x4, offset = 0x4, fixed_abs, tag = 'smem constant byte address 0x4 - core index']
  #allocation1 [shape = 'u32[72,128]{1,0:T(1,128)}', space=vmem, size = 0x9000, scoped, tag = 'internal scratch']
  #allocation2 [shape = 'f32[72,256]{1,0:T(8,128)}', space=vmem, size = 0x12000, scoped, tag = 'scratch operand']
  %s0 = inlined_call_operand.vmem [shape: f32[2,16,256], index: 0, kind: input, shape index: {}]
  %s1 = inlined_call_operand.vmem [shape: f32[9,1,256], index: 1, kind: input, shape index: {}]
  %s2 = inlined_call_operand.vmem [shape: f32[2,32,72], index: 2, kind: input, shape index: {}]
  %s3 = inlined_call_operand.vmem [shape: f32[2,32,16], index: 3, kind: input, shape index: {}]
  %s4 = inlined_call_operand.vmem [shape: f32[2,32,1], index: 4, kind: input, shape index: {}]
  %s5 = inlined_call_operand.vmem [shape: f32[2,16,32], index: 5, kind: input, shape index: {}]
  %s6 = inlined_call_operand.vmem [shape: f32[2,16,256], index: 6, kind: output, shape index: {}]
  %s7 = sld [smem:[#allocation0]]
  $region57: #{basic_stage_forward.1} parent=0
    _
  %s9 = ssub.s32 1, %s7
  %s10 = scalar_select 0, %s9, %s7
  loop: start=0, step=1, limit=4
  $region2: #{basic_stage_forward.1} parent=0 // loop_pre_header
    _
  $region3: #{basic_stage_forward.1} parent=0 // loop_header
    %s12 = sphi 0, %s16
    %p13 = scmp.ge.s32.totalorder %s12, 4
    %s22 = sphi 0, %s24
    %s25 = sphi 0, %s22
    %s26 = sphi 0, %s25
    %s42 = sphi 0, %s26
    %s46 = sphi 0, %s46
    %s48 = sphi 0, %s46
    %s49 = sphi 0, %s48
    %s63 = sphi 0, %s49
    %s67 = sphi 0, %s67
    %s69 = sphi 0, %s67
    %s70 = sphi 0, %s69
    %s84 = sphi 0, %s70
    %s88 = sphi 0, %s88
    %s90 = sphi 0, %s88
    %s91 = sphi 0, %s90
    %s105 = sphi 0, %s91
    %s109 = sphi 0, %s109
    %s111 = sphi 0, %s109
    %s112 = sphi 0, %s111
    %s126 = sphi 0, %s112
    %s130 = sphi 0, %s130
    %s132 = sphi 0, %s130
    %s133 = sphi 0, %s132
    %s147 = sphi 0, %s133
    %s153 = sphi 0, %s155
    %s156 = sphi 0, %s153
    %s157 = sphi 0, %s156
    %s173 = sphi 0, %s157
  $region4: #{basic_stage_forward.1} parent=0 // loop_header_branch
    %15 = sbr.rel (%p13) target = $region8
  $region5: #{basic_stage_forward.1} parent=0 // loop_body
    %s17 = ssub.s32 %s12, 1
    %s18 = ssub.s32 %s12, 2
    %s19 = sadd.s32 %s12, 1
    %s20 = ssub.s32 %s12, %s19
    %p21 = scmp.eq.s32.totalorder %s20, 0
    %s23 = sadd.s32 %s22, 1
    %s24 = scalar_select %p21, %s22, %s23
    %p27 = pneg %p21
    %p28 = scmp.eq.s32.totalorder %s12, 1
    %p29 = por %p27, %p28
    %p30 = scmp.ne.s32.totalorder %s22, %s25
    %p31 = scmp.eq.s32.totalorder %s12, 0
    %p32 = por %p30, %p31
    %p33 = scmp.ne.s32.totalorder %s22, %s25
    %p34 = scmp.eq.s32.totalorder %s17, 1
    %p35 = por %p33, %p34
    %p36 = scmp.ne.s32.totalorder %s25, %s26
    %p37 = scmp.eq.s32.totalorder %s17, 0
    %p38 = por %p36, %p37
    %p39 = scmp.ne.s32.totalorder %s25, %s26
    %p40 = scmp.eq.s32.totalorder %s18, 1
    %p41 = por %p39, %p40
    %p43 = scmp.ne.s32.totalorder %s26, %s42
    %p44 = scmp.eq.s32.totalorder %s18, 0
    %p45 = por %p43, %p44
    %s47 = sadd.s32 %s46, 1
    %p50 = scmp.eq.s32.totalorder %s12, 1
    %p51 = scmp.ne.s32.totalorder %s46, %s48
    %p52 = scmp.eq.s32.totalorder %s12, 0
    %p53 = por %p51, %p52
    %p54 = scmp.ne.s32.totalorder %s46, %s48
    %p55 = scmp.eq.s32.totalorder %s17, 1
    %p56 = por %p54, %p55
    %p57 = scmp.ne.s32.totalorder %s48, %s49
    %p58 = scmp.eq.s32.totalorder %s17, 0
    %p59 = por %p57, %p58
    %p60 = scmp.ne.s32.totalorder %s48, %s49
    %p61 = scmp.eq.s32.totalorder %s18, 1
    %p62 = por %p60, %p61
    %p64 = scmp.ne.s32.totalorder %s49, %s63
    %p65 = scmp.eq.s32.totalorder %s18, 0
    %p66 = por %p64, %p65
    %s68 = sadd.s32 %s67, 1
    %p71 = scmp.eq.s32.totalorder %s12, 1
    %p72 = scmp.ne.s32.totalorder %s67, %s69
    %p73 = scmp.eq.s32.totalorder %s12, 0
    %p74 = por %p72, %p73
    %p75 = scmp.ne.s32.totalorder %s67, %s69
    %p76 = scmp.eq.s32.totalorder %s17, 1
    %p77 = por %p75, %p76
    %p78 = scmp.ne.s32.totalorder %s69, %s70
    %p79 = scmp.eq.s32.totalorder %s17, 0
    %p80 = por %p78, %p79
    %p81 = scmp.ne.s32.totalorder %s69, %s70
    %p82 = scmp.eq.s32.totalorder %s18, 1
    %p83 = por %p81, %p82
    %p85 = scmp.ne.s32.totalorder %s70, %s84
    %p86 = scmp.eq.s32.totalorder %s18, 0
    %p87 = por %p85, %p86
    %s89 = sadd.s32 %s88, 1
    %p92 = scmp.eq.s32.totalorder %s12, 1
    %p93 = scmp.ne.s32.totalorder %s88, %s90
    %p94 = scmp.eq.s32.totalorder %s12, 0
    %p95 = por %p93, %p94
    %p96 = scmp.ne.s32.totalorder %s88, %s90
    %p97 = scmp.eq.s32.totalorder %s17, 1
    %p98 = por %p96, %p97
    %p99 = scmp.ne.s32.totalorder %s90, %s91
    %p100 = scmp.eq.s32.totalorder %s17, 0
    %p101 = por %p99, %p100
    %p102 = scmp.ne.s32.totalorder %s90, %s91
    %p103 = scmp.eq.s32.totalorder %s18, 1
    %p104 = por %p102, %p103
    %p106 = scmp.ne.s32.totalorder %s91, %s105
    %p107 = scmp.eq.s32.totalorder %s18, 0
    %p108 = por %p106, %p107
    %s110 = sadd.s32 %s109, 1
    %p113 = scmp.eq.s32.totalorder %s12, 1
    %p114 = scmp.ne.s32.totalorder %s109, %s111
    %p115 = scmp.eq.s32.totalorder %s12, 0
    %p116 = por %p114, %p115
    %p117 = scmp.ne.s32.totalorder %s109, %s111
    %p118 = scmp.eq.s32.totalorder %s17, 1
    %p119 = por %p117, %p118
    %p120 = scmp.ne.s32.totalorder %s111, %s112
    %p121 = scmp.eq.s32.totalorder %s17, 0
    %p122 = por %p120, %p121
    %p123 = scmp.ne.s32.totalorder %s111, %s112
    %p124 = scmp.eq.s32.totalorder %s18, 1
    %p125 = por %p123, %p124
    %p127 = scmp.ne.s32.totalorder %s112, %s126
    %p128 = scmp.eq.s32.totalorder %s18, 0
    %p129 = por %p127, %p128
    %s131 = sadd.s32 %s130, 1
    %p134 = scmp.eq.s32.totalorder %s12, 1
    %p135 = scmp.ne.s32.totalorder %s130, %s132
    %p136 = scmp.eq.s32.totalorder %s12, 0
    %p137 = por %p135, %p136
    %p138 = scmp.ne.s32.totalorder %s130, %s132
    %p139 = scmp.eq.s32.totalorder %s17, 1
    %p140 = por %p138, %p139
    %p141 = scmp.ne.s32.totalorder %s132, %s133
    %p142 = scmp.eq.s32.totalorder %s17, 0
    %p143 = por %p141, %p142
    %p144 = scmp.ne.s32.totalorder %s132, %s133
    %p145 = scmp.eq.s32.totalorder %s18, 1
    %p146 = por %p144, %p145
    %p148 = scmp.ne.s32.totalorder %s133, %s147
    %p149 = scmp.eq.s32.totalorder %s18, 0
    %p150 = por %p148, %p149
    %s151 = ssub.s32 %s12, %s19
    %p152 = scmp.eq.s32.totalorder %s151, 0
    %s154 = sadd.s32 %s153, 1
    %s155 = scalar_select %p152, %s153, %s154
    %p158 = pneg %p152
    %p159 = scmp.eq.s32.totalorder %s12, 1
    %p160 = por %p158, %p159
    %p161 = scmp.ne.s32.totalorder %s153, %s156
    %p162 = scmp.eq.s32.totalorder %s12, 0
    %p163 = por %p161, %p162
    %p164 = scmp.ne.s32.totalorder %s153, %s156
    %p165 = scmp.eq.s32.totalorder %s17, 1
    %p166 = por %p164, %p165
    %p167 = scmp.ne.s32.totalorder %s156, %s157
    %p168 = scmp.eq.s32.totalorder %s17, 0
    %p169 = por %p167, %p168
    %p170 = scmp.ne.s32.totalorder %s156, %s157
    %p171 = scmp.eq.s32.totalorder %s18, 1
    %p172 = por %p170, %p171
    %p174 = scmp.ne.s32.totalorder %s157, %s173
    %p175 = scmp.eq.s32.totalorder %s18, 0
    %p176 = por %p174, %p175
    %p177 = scmp.le.s32.totalorder 1, %s12
    %p178 = scmp.lt.s32.totalorder %s12, 3
    %p179 = pnand %p177, %p178
    %p180 = pneg %p179
    // Predicated region
    $region9: #{basic_stage_forward.1} parent=5 // pred_check
      _
    $region10: #{basic_stage_forward.1} parent=5 // pred_check_branch
      %182 = sbr.rel (%p179) target = $region12
    $region11: #{basic_stage_forward.1} parent=5 // pred_region
      %s183 = ssub.s32 %s12, 1
      // Predicated region
      $region13: #{basic_stage_forward.1} parent=11 // pred_check
        %p184 = pneg %p59
      $region14: #{basic_stage_forward.1} parent=11 // pred_check_branch
        %186 = sbr.rel (%p184) target = $region16
      $region15: #{basic_stage_forward.1} parent=11 // pred_region
        _
      $region16: #{basic_stage_forward.1} parent=11 // pred_fallthru
        _
      // Predicated region
      $region17: #{basic_stage_forward.1} parent=11 // pred_check
        %p187 = pneg %p80
      $region18: #{basic_stage_forward.1} parent=11 // pred_check_branch
        %189 = sbr.rel (%p187) target = $region20
      $region19: #{basic_stage_forward.1} parent=11 // pred_region
        _
      $region20: #{basic_stage_forward.1} parent=11 // pred_fallthru
        _
      // Predicated region
      $region21: #{basic_stage_forward.1} parent=11 // pred_check
        %p190 = pneg %p101
      $region22: #{basic_stage_forward.1} parent=11 // pred_check_branch
        %192 = sbr.rel (%p190) target = $region24
      $region23: #{basic_stage_forward.1} parent=11 // pred_region
        _
      $region24: #{basic_stage_forward.1} parent=11 // pred_fallthru
        _
      // Predicated region
      $region25: #{basic_stage_forward.1} parent=11 // pred_check
        %p193 = pneg %p122
      $region26: #{basic_stage_forward.1} parent=11 // pred_check_branch
        %195 = sbr.rel (%p193) target = $region28
      $region27: #{basic_stage_forward.1} parent=11 // pred_region
        _
      $region28: #{basic_stage_forward.1} parent=11 // pred_fallthru
        _
      // Predicated region
      $region29: #{basic_stage_forward.1} parent=11 // pred_check
        %p196 = pneg %p143
      $region30: #{basic_stage_forward.1} parent=11 // pred_check_branch
        %198 = sbr.rel (%p196) target = $region32
      $region31: #{basic_stage_forward.1} parent=11 // pred_region
        _
      $region32: #{basic_stage_forward.1} parent=11 // pred_fallthru
        _
    $region12: #{basic_stage_forward.1} parent=5 // pred_fallthru
      _
    %p199 = scmp.lt.s32.totalorder %s12, 2
    // Predicated region
    $region33: #{basic_stage_forward.1} parent=5 // pred_check
      %p200 = pneg %p199
    $region34: #{basic_stage_forward.1} parent=5 // pred_check_branch
      %202 = sbr.rel (%p200) target = $region36
    $region35: #{basic_stage_forward.1} parent=5 // pred_region
      // Predicated region
      $region37: #{basic_stage_forward.1} parent=35 // pred_check
        %p203 = pneg %p32
      $region38: #{basic_stage_forward.1} parent=35 // pred_check_branch
        %205 = sbr.rel (%p203) target = $region40
      $region39: #{basic_stage_forward.1} parent=35 // pred_region
        %p206 = scmp.lt.s32.totalorder %s12, 1
        %s207 = scalar_select %p206, %s12, 1
        %s208 = smul.addr %s207, 4
        %s209 = smul.addr %s208, 8
        %s210 = scalar_lea.vmem %s0, %s209
      $region40: #{basic_stage_forward.1} parent=35 // pred_fallthru
        _
    $region36: #{basic_stage_forward.1} parent=5 // pred_fallthru
      _
    %p211 = scmp.le.s32.totalorder 1, %s12
    %p212 = scmp.lt.s32.totalorder %s12, 3
    %p213 = pnand %p211, %p212
    %p214 = pneg %p213
    // Predicated region
    $region41: #{basic_stage_forward.1} parent=5 // pred_check
      _
    $region42: #{basic_stage_forward.1} parent=5 // pred_check_branch
      %216 = sbr.rel (%p213) target = $region44
    $region43: #{basic_stage_forward.1} parent=5 // pred_region
      %s217 = ssub.s32 %s12, 1
      %p218 = scmp.lt.s32.totalorder %s17, 1
      %s219 = scalar_select %p218, %s17, 1
      %s220 = smul.addr %s219, 4
      %s221 = smul.addr %s220, 8
      %s222 = scalar_lea.vmem %s0, %s221
      %p223 = pneg %p38
      %p224 = pneg %p35
      %p225 = pneg %p59
      %p226 = pneg %p56
      %p227 = pneg %p80
      %p228 = pneg %p77
      %p229 = pneg %p101
      %p230 = pneg %p98
      %p231 = pneg %p122
      %p232 = pneg %p119
      %p233 = pneg %p143
      %p234 = pneg %p140
      %p235 = pneg %p169
      %p236 = pneg %p166
      %p237 = scmp.lt.s32.totalorder %s17, 1
      %s238 = scalar_select %p237, %s17, 1
      %s239 = smul.addr %s238, 4
      %s240 = smul.addr %s239, 8
      %s241 = scalar_lea.vmem %s6, %s240
      %p242 = scmp.lt.s32.totalorder %s17, 1
      %s243 = scalar_select %p242, %s17, 1
      %s244 = smul.addr %s243, 4
      %s245 = smul.addr %s244, 8
      %s246 = scalar_lea.vmem %s0, %s245
      %p247 = scmp.lt.s32.totalorder %s17, 1
      %s248 = scalar_select %p247, %s17, 1
      %s249 = smul.addr %s248, 4
      %s250 = smul.addr %s249, 8
      %s251 = scalar_lea.vmem %s6, %s250
      %v252 = vld [vmem:[%s246] sm:$0xff]
      %v253 = vld [vmem:[%s246 + $0x8] sm:$0xff]
      %v254 = vld [vmem:[%s246 + $0x10] sm:$0xff]
      %v255 = vld [vmem:[%s246 + $0x18] sm:$0xff]
      %256 = vrot.lane.b32.xlu0 %v252, 17
      %v257 = vpop.permute.xlu0 %256
      %258 = vrot.lane.b32.xlu0 %v253, 17
      %v259 = vpop.permute.xlu0 %258
      %v260 = vlaneseq
      %v261 = vand.u32 %v260, 127
      %vm262 = vcmp.lt.s32.totalorder %v261, 17
      %v263 = vsel %vm262, %v257, %v259
      %v264 = vsel %vm262, %v259, %v257
      %v265 = vld [vmem:[%s1] sm:$0x3]
      %v267 = vperm.slane %v265, 0
      %v268 = vperm.slane %v265, 1
      %v271 = vmul.f32 %v264, %v267
      %v272 = vmul.f32 %v263, %v268
      %273 = vst [vmem:[#allocation2] sm:$0xff] %v271
      %274 = vst [vmem:[#allocation2 + $0x8] sm:$0xff] %v272
      %275 = vrot.lane.b32.xlu0 %v252, 16
      %v276 = vpop.permute.xlu0 %275
      %277 = vrot.lane.b32.xlu0 %v253, 16
      %v278 = vpop.permute.xlu0 %277
      %vm279 = vcmp.lt.s32.totalorder %v261, 16
      %v280 = vsel %vm279, %v276, %v278
      %v281 = vsel %vm279, %v278, %v276
      %s282 = scalar_lea.vmem %s1, 2
      %v283 = vld [vmem:[%s282] sm:$0x3]
      %v285 = vperm.slane %v283, 0
      %v286 = vperm.slane %v283, 1
      %v289 = vmul.f32 %v281, %v285
      %v290 = vmul.f32 %v280, %v286
      %291 = vst [vmem:[#allocation2 + $0x10] sm:$0xff] %v289
      %292 = vst [vmem:[#allocation2 + $0x18] sm:$0xff] %v290
      %293 = vrot.lane.b32.xlu0 %v252, 15
      %v294 = vpop.permute.xlu0 %293
      %295 = vrot.lane.b32.xlu0 %v253, 15
      %v296 = vpop.permute.xlu0 %295
      %vm297 = vcmp.lt.s32.totalorder %v261, 15
      %v298 = vsel %vm297, %v294, %v296
      %v299 = vsel %vm297, %v296, %v294
      %s300 = scalar_lea.vmem %s1, 4
      %v301 = vld [vmem:[%s300] sm:$0x3]
      %v303 = vperm.slane %v301, 0
      %v304 = vperm.slane %v301, 1
      %v307 = vmul.f32 %v299, %v303
      %v308 = vmul.f32 %v298, %v304
      %309 = vst [vmem:[#allocation2 + $0x20] sm:$0xff] %v307
      %310 = vst [vmem:[#allocation2 + $0x28] sm:$0xff] %v308
      %311 = vrot.lane.b32.xlu0 %v252, 1
      %v312 = vpop.permute.xlu0 %311
      %313 = vrot.lane.b32.xlu0 %v253, 1
      %v314 = vpop.permute.xlu0 %313
      %vm315 = vcmp.lt.s32.totalorder %v261, 1
      %v316 = vsel %vm315, %v312, %v314
      %v317 = vsel %vm315, %v314, %v312
      %s318 = scalar_lea.vmem %s1, 6
      %v319 = vld [vmem:[%s318] sm:$0x3]
      %v321 = vperm.slane %v319, 0
      %v322 = vperm.slane %v319, 1
      %v325 = vmul.f32 %v317, %v321
      %v326 = vmul.f32 %v316, %v322
      %327 = vst [vmem:[#allocation2 + $0x30] sm:$0xff] %v325
      %328 = vst [vmem:[#allocation2 + $0x38] sm:$0xff] %v326
      %s329 = scalar_lea.vmem %s1, 8
      %v330 = vld [vmem:[%s329] sm:$0x3]
      %v332 = vperm.slane %v330, 0
      %v333 = vperm.slane %v330, 1
      %v336 = vmul.f32 %v252, %v332
      %v337 = vmul.f32 %v253, %v333
      %338 = vst [vmem:[#allocation2 + $0x40] sm:$0xff] %v336
      %339 = vst [vmem:[#allocation2 + $0x48] sm:$0xff] %v337
      %340 = vrot.lane.b32.xlu0 %v252, 127
      %v341 = vpop.permute.xlu0 %340
      %342 = vrot.lane.b32.xlu0 %v253, 127
      %v343 = vpop.permute.xlu0 %342
      %vm344 = vcmp.lt.s32.totalorder %v261, 127
      %v345 = vsel %vm344, %v341, %v343
      %v346 = vsel %vm344, %v343, %v341
      %s347 = scalar_lea.vmem %s1, 10
      %v348 = vld [vmem:[%s347] sm:$0x3]
      %v350 = vperm.slane %v348, 0
      %v351 = vperm.slane %v348, 1
      %v354 = vmul.f32 %v345, %v350
      %v355 = vmul.f32 %v346, %v351
      %356 = vst [vmem:[#allocation2 + $0x50] sm:$0xff] %v354
      %357 = vst [vmem:[#allocation2 + $0x58] sm:$0xff] %v355
      %358 = vrot.lane.b32.xlu0 %v252, 113
      %v359 = vpop.permute.xlu0 %358
      %360 = vrot.lane.b32.xlu0 %v253, 113
      %v361 = vpop.permute.xlu0 %360
      %vm362 = vcmp.lt.s32.totalorder %v261, 113
      %v363 = vsel %vm362, %v359, %v361
      %v364 = vsel %vm362, %v361, %v359
      %s365 = scalar_lea.vmem %s1, 12
      %v366 = vld [vmem:[%s365] sm:$0x3]
      %v368 = vperm.slane %v366, 0
      %v369 = vperm.slane %v366, 1
      %v372 = vmul.f32 %v363, %v368
      %v373 = vmul.f32 %v364, %v369
      %374 = vst [vmem:[#allocation2 + $0x60] sm:$0xff] %v372
      %375 = vst [vmem:[#allocation2 + $0x68] sm:$0xff] %v373
      %376 = vrot.lane.b32.xlu0 %v252, 112
      %v377 = vpop.permute.xlu0 %376
      %378 = vrot.lane.b32.xlu0 %v253, 112
      %v379 = vpop.permute.xlu0 %378
      %vm380 = vcmp.lt.s32.totalorder %v261, 112
      %v381 = vsel %vm380, %v377, %v379
      %v382 = vsel %vm380, %v379, %v377
      %s383 = scalar_lea.vmem %s1, 14
      %v384 = vld [vmem:[%s383] sm:$0x3]
      %v386 = vperm.slane %v384, 0
      %v387 = vperm.slane %v384, 1
      %v390 = vmul.f32 %v381, %v386
      %v391 = vmul.f32 %v382, %v387
      %392 = vst [vmem:[#allocation2 + $0x70] sm:$0xff] %v390
      %393 = vst [vmem:[#allocation2 + $0x78] sm:$0xff] %v391
      %394 = vrot.lane.b32.xlu0 %v252, 111
      %v395 = vpop.permute.xlu0 %394
      %396 = vrot.lane.b32.xlu0 %v253, 111
      %v397 = vpop.permute.xlu0 %396
      %vm398 = vcmp.lt.s32.totalorder %v261, 111
      %v399 = vsel %vm398, %v395, %v397
      %v400 = vsel %vm398, %v397, %v395
      %s401 = scalar_lea.vmem %s1, 16
      %v402 = vld [vmem:[%s401] sm:$0x3]
      %v404 = vperm.slane %v402, 0
      %v405 = vperm.slane %v402, 1
      %v408 = vmul.f32 %v399, %v404
      %v409 = vmul.f32 %v400, %v405
      %410 = vst [vmem:[#allocation2 + $0x80] sm:$0xff] %v408
      %411 = vst [vmem:[#allocation2 + $0x88] sm:$0xff] %v409
      %v412 = vld [vmem:[%s2] sm:$0xff]
      %v413 = vld [vmem:[%s2 + $0x8] sm:$0xff]
      %v414 = vld [vmem:[%s2 + $0x10] sm:$0xff]
      %v415 = vld [vmem:[%s2 + $0x18] sm:$0xff]
      %v416 = vld [vmem:[#allocation2] sm:$0xff]
      %v417 = vld [vmem:[#allocation2 + $0x8] sm:$0xff]
      %v418 = vld [vmem:[#allocation2 + $0x10] sm:$0xff]
      %v419 = vld [vmem:[#allocation2 + $0x18] sm:$0xff]
      %v420 = vld [vmem:[#allocation2 + $0x20] sm:$0xff]
      %v421 = vld [vmem:[#allocation2 + $0x28] sm:$0xff]
      %v422 = vld [vmem:[#allocation2 + $0x30] sm:$0xff]
      %v423 = vld [vmem:[#allocation2 + $0x38] sm:$0xff]
      %v424 = vld [vmem:[#allocation2 + $0x40] sm:$0xff]
      %v425 = vld [vmem:[#allocation2 + $0x48] sm:$0xff]
      %v426 = vld [vmem:[#allocation2 + $0x50] sm:$0xff]
      %v427 = vld [vmem:[#allocation2 + $0x58] sm:$0xff]
      %v428 = vld [vmem:[#allocation2 + $0x60] sm:$0xff]
      %v429 = vld [vmem:[#allocation2 + $0x68] sm:$0xff]
      %v430 = vld [vmem:[#allocation2 + $0x70] sm:$0xff]
      %v431 = vld [vmem:[#allocation2 + $0x78] sm:$0xff]
      %v432 = vld [vmem:[#allocation2 + $0x80] sm:$0xff]
      %v433 = vld [vmem:[#allocation2 + $0x88] sm:$0xff]
      %v434 = vld [vmem:[%s3] sm:$0xff]
      %v435 = vld [vmem:[%s3 + $0x8] sm:$0xff]
      %v436 = vld [vmem:[%s3 + $0x10] sm:$0xff]
      %v437 = vld [vmem:[%s3 + $0x18] sm:$0xff]
      %vm438 = vcmask 130048
      %v440 = vsel %vm438, %v434, 0
      %v443 = vsel %vm438, %v435, 0
      %v446 = vsel %vm438, %v436, 0
      %v449 = vsel %vm438, %v437, 0
      %451 = vmatpush.msra.mxu0 0.0
      %452 = vmatpush.msra.mxu0 0.0
      %453 = vmatpush.msra.mxu0 0.0
      %454 = vmatpush.msra.mxu0 0.0
      %455 = vmatpush.msra.mxu0 0.0
      %456 = vmatpush.msra.mxu0 0.0
      %457 = vmatpush.msra.mxu0 0.0
      %458 = vmatpush.msra.mxu0 0.0
      %459 = vmatpush.msra.mxu0 0.0
      %460 = vmatpush.msra.mxu0 0.0
      %461 = vmatpush.msra.mxu0 0.0
      %462 = vmatpush.msra.mxu0 0.0
      %463 = vmatpush.msra.mxu0 0.0
      %464 = vmatpush.msra.mxu0 0.0
      %465 = vmatpush.msra.mxu0 %v254
      %466 = vmatpush.msra.mxu0 %v252
      %467 = vmatmul.f32.gmra.mxu0 %v440
      %v468 = vpop.f32.mrf.mxu0
      %v469 = vadd.f32 0.0, %v468
      %470 = vmatmul.f32.gmra.mxu0 %v443
      %v471 = vpop.f32.mrf.mxu0
      %v472 = vadd.f32 0.0, %v471
      %473 = vmatmul.f32.gmra.mxu0 %v446
      %v474 = vpop.f32.mrf.mxu0
      %v475 = vadd.f32 0.0, %v474
      %476 = vmatmul.f32.gmra.mxu0 %v449
      %v477 = vpop.f32.mrf.mxu0
      %v478 = vadd.f32 0.0, %v477
      %479 = vdwg.mxu0
      %480 = vmatpush.msra.mxu0 0.0
      %481 = vmatpush.msra.mxu0 0.0
      %482 = vmatpush.msra.mxu0 0.0
      %483 = vmatpush.msra.mxu0 0.0
      %484 = vmatpush.msra.mxu0 0.0
      %485 = vmatpush.msra.mxu0 0.0
      %486 = vmatpush.msra.mxu0 0.0
      %487 = vmatpush.msra.mxu0 0.0
      %488 = vmatpush.msra.mxu0 0.0
      %489 = vmatpush.msra.mxu0 0.0
      %490 = vmatpush.msra.mxu0 0.0
      %491 = vmatpush.msra.mxu0 0.0
      %492 = vmatpush.msra.mxu0 0.0
      %493 = vmatpush.msra.mxu0 0.0
      %494 = vmatpush.msra.mxu0 %v255
      %495 = vmatpush.msra.mxu0 %v253
      %496 = vmatmul.f32.gmra.mxu0 %v440
      %v497 = vpop.f32.mrf.mxu0
      %v498 = vadd.f32 0.0, %v497
      %499 = vmatmul.f32.gmra.mxu0 %v443
      %v500 = vpop.f32.mrf.mxu0
      %v501 = vadd.f32 0.0, %v500
      %502 = vmatmul.f32.gmra.mxu0 %v446
      %v503 = vpop.f32.mrf.mxu0
      %v504 = vadd.f32 0.0, %v503
      %505 = vmatmul.f32.gmra.mxu0 %v449
      %v506 = vpop.f32.mrf.mxu0
      %v507 = vadd.f32 0.0, %v506
      %508 = vdwg.mxu0
      %vm509 = vcmask 588800
      %v511 = vsel %vm509, %v412, 0
      %v514 = vsel %vm509, %v413, 0
      %v517 = vsel %vm509, %v414, 0
      %v520 = vsel %vm509, %v415, 0
      %522 = vmatpush.msra.mxu0 0.0
      %523 = vmatpush.msra.mxu0 0.0
      %524 = vmatpush.msra.mxu0 0.0
      %525 = vmatpush.msra.mxu0 0.0
      %526 = vmatpush.msra.mxu0 0.0
      %527 = vmatpush.msra.mxu0 0.0
      %528 = vmatpush.msra.mxu0 0.0
      %529 = vmatpush.msra.mxu0 %v432
      %530 = vmatpush.msra.mxu0 %v430
      %531 = vmatpush.msra.mxu0 %v428
      %532 = vmatpush.msra.mxu0 %v426
      %533 = vmatpush.msra.mxu0 %v424
      %534 = vmatpush.msra.mxu0 %v422
      %535 = vmatpush.msra.mxu0 %v420
      %536 = vmatpush.msra.mxu0 %v418
      %537 = vmatpush.msra.mxu0 %v416
      %538 = vmatmul.f32.gmra.mxu0 %v511
      %v539 = vpop.f32.mrf.mxu0
      %v540 = vadd.f32 %v469, %v539
      %541 = vmatmul.f32.gmra.mxu0 %v514
      %v542 = vpop.f32.mrf.mxu0
      %v543 = vadd.f32 %v472, %v542
      %544 = vmatmul.f32.gmra.mxu0 %v517
      %v545 = vpop.f32.mrf.mxu0
      %v546 = vadd.f32 %v475, %v545
      %547 = vmatmul.f32.gmra.mxu0 %v520
      %v548 = vpop.f32.mrf.mxu0
      %v549 = vadd.f32 %v478, %v548
      %550 = vdwg.mxu0
      %551 = vmatpush.msra.mxu0 0.0
      %552 = vmatpush.msra.mxu0 0.0
      %553 = vmatpush.msra.mxu0 0.0
      %554 = vmatpush.msra.mxu0 0.0
      %555 = vmatpush.msra.mxu0 0.0
      %556 = vmatpush.msra.mxu0 0.0
      %557 = vmatpush.msra.mxu0 0.0
      %558 = vmatpush.msra.mxu0 %v433
      %559 = vmatpush.msra.mxu0 %v431
      %560 = vmatpush.msra.mxu0 %v429
      %561 = vmatpush.msra.mxu0 %v427
      %562 = vmatpush.msra.mxu0 %v425
      %563 = vmatpush.msra.mxu0 %v423
      %564 = vmatpush.msra.mxu0 %v421
      %565 = vmatpush.msra.mxu0 %v419
      %566 = vmatpush.msra.mxu0 %v417
      %567 = vmatmul.f32.gmra.mxu0 %v511
      %v568 = vpop.f32.mrf.mxu0
      %v569 = vadd.f32 %v498, %v568
      %570 = vmatmul.f32.gmra.mxu0 %v514
      %v571 = vpop.f32.mrf.mxu0
      %v572 = vadd.f32 %v501, %v571
      %573 = vmatmul.f32.gmra.mxu0 %v517
      %v574 = vpop.f32.mrf.mxu0
      %v575 = vadd.f32 %v504, %v574
      %576 = vmatmul.f32.gmra.mxu0 %v520
      %v577 = vpop.f32.mrf.mxu0
      %v578 = vadd.f32 %v507, %v577
      %579 = vdwg.mxu0
      %v580 = vld [vmem:[%s4] sm:$0xff]
      %v581 = vld [vmem:[%s4 + $0x8] sm:$0xff]
      %v582 = vld [vmem:[%s4 + $0x10] sm:$0xff]
      %v583 = vld [vmem:[%s4 + $0x18] sm:$0xff]
      %585 = vset.pattern.permute.xlu0 0
      %586 = vperm.xlu0 %585, %v580
      %v587 = vpop.permute.xlu0 %586
      %590 = vset.pattern.permute.xlu0 0
      %591 = vperm.xlu0 %590, %v581
      %v592 = vpop.permute.xlu0 %591
      %595 = vset.pattern.permute.xlu0 0
      %596 = vperm.xlu0 %595, %v582
      %v597 = vpop.permute.xlu0 %596
      %600 = vset.pattern.permute.xlu0 0
      %601 = vperm.xlu0 %600, %v583
      %v602 = vpop.permute.xlu0 %601
      %v604 = vadd.f32 %v540, %v587
      %v605 = vadd.f32 %v569, %v587
      %v606 = vadd.f32 %v543, %v592
      %v607 = vadd.f32 %v572, %v592
      %v608 = vadd.f32 %v546, %v597
      %v609 = vadd.f32 %v575, %v597
      %v610 = vadd.f32 %v549, %v602
      %v611 = vadd.f32 %v578, %v602
      %v612 = vmul.f32 %v604, 0.5
      %v613 = vmul.f32 %v605, 0.5
      %v614 = vmul.f32 %v606, 0.5
      %v615 = vmul.f32 %v607, 0.5
      %v616 = vmul.f32 %v608, 0.5
      %v617 = vmul.f32 %v609, 0.5
      %v618 = vmul.f32 %v610, 0.5
      %v619 = vmul.f32 %v611, 0.5
      %v620 = vmul.f32 %v604, 0.044715
      %v621 = vmul.f32 %v605, 0.044715
      %v622 = vmul.f32 %v606, 0.044715
      %v623 = vmul.f32 %v607, 0.044715
      %v624 = vmul.f32 %v608, 0.044715
      %v625 = vmul.f32 %v609, 0.044715
      %v626 = vmul.f32 %v610, 0.044715
      %v627 = vmul.f32 %v611, 0.044715
      %v628 = vmul.f32 %v620, %v604
      %v629 = vmul.f32 %v621, %v605
      %v630 = vmul.f32 %v622, %v606
      %v631 = vmul.f32 %v623, %v607
      %v632 = vmul.f32 %v624, %v608
      %v633 = vmul.f32 %v625, %v609
      %v634 = vmul.f32 %v626, %v610
      %v635 = vmul.f32 %v627, %v611
      %v636 = vmul.f32 %v628, %v604
      %v637 = vmul.f32 %v629, %v605
      %v638 = vmul.f32 %v630, %v606
      %v639 = vmul.f32 %v631, %v607
      %v640 = vmul.f32 %v632, %v608
      %v641 = vmul.f32 %v633, %v609
      %v642 = vmul.f32 %v634, %v610
      %v643 = vmul.f32 %v635, %v611
      %v644 = vadd.f32 %v604, %v636
      %v645 = vadd.f32 %v605, %v637
      %v646 = vadd.f32 %v606, %v638
      %v647 = vadd.f32 %v607, %v639
      %v648 = vadd.f32 %v608, %v640
      %v649 = vadd.f32 %v609, %v641
      %v650 = vadd.f32 %v610, %v642
      %v651 = vadd.f32 %v611, %v643
      %v652 = vmul.f32 %v644, 0.7978846
      %v653 = vmul.f32 %v645, 0.7978846
      %v654 = vmul.f32 %v646, 0.7978846
      %v655 = vmul.f32 %v647, 0.7978846
      %v656 = vmul.f32 %v648, 0.7978846
      %v657 = vmul.f32 %v649, 0.7978846
      %v658 = vmul.f32 %v650, 0.7978846
      %v659 = vmul.f32 %v651, 0.7978846
      %v660 = vtanh.pop %v652
      %v661 = vtanh.pop %v653
      %v662 = vtanh.pop %v654
      %v663 = vtanh.pop %v655
      %v664 = vtanh.pop %v656
      %v665 = vtanh.pop %v657
      %v666 = vtanh.pop %v658
      %v667 = vtanh.pop %v659
      %v668 = vadd.f32 %v660, 1.0
      %v669 = vadd.f32 %v661, 1.0
      %v670 = vadd.f32 %v662, 1.0
      %v671 = vadd.f32 %v663, 1.0
      %v672 = vadd.f32 %v664, 1.0
      %v673 = vadd.f32 %v665, 1.0
      %v674 = vadd.f32 %v666, 1.0
      %v675 = vadd.f32 %v667, 1.0
      %v676 = vmul.f32 %v612, %v668
      %v677 = vmul.f32 %v613, %v669
      %v678 = vmul.f32 %v614, %v670
      %v679 = vmul.f32 %v615, %v671
      %v680 = vmul.f32 %v616, %v672
      %v681 = vmul.f32 %v617, %v673
      %v682 = vmul.f32 %v618, %v674
      %v683 = vmul.f32 %v619, %v675
      %v684 = vld [vmem:[%s5] sm:$0xff]
      %v685 = vld [vmem:[%s5 + $0x8] sm:$0xff]
      %vm686 = vcmask 261120
      %v688 = vsel %vm686, %v684, 0
      %v691 = vsel %vm686, %v685, 0
      %693 = vmatpush.msra.mxu0 0.0
      %694 = vmatpush.msra.mxu0 0.0
      %695 = vmatpush.msra.mxu0 0.0
      %696 = vmatpush.msra.mxu0 0.0
      %697 = vmatpush.msra.mxu0 0.0
      %698 = vmatpush.msra.mxu0 0.0
      %699 = vmatpush.msra.mxu0 0.0
      %700 = vmatpush.msra.mxu0 0.0
      %701 = vmatpush.msra.mxu0 0.0
      %702 = vmatpush.msra.mxu0 0.0
      %703 = vmatpush.msra.mxu0 0.0
      %704 = vmatpush.msra.mxu0 0.0
      %705 = vmatpush.msra.mxu0 %v682
      %706 = vmatpush.msra.mxu0 %v680
      %707 = vmatpush.msra.mxu0 %v678
      %708 = vmatpush.msra.mxu0 %v676
      %709 = vmatmul.f32.gmra.mxu0 %v688
      %v710 = vpop.f32.mrf.mxu0
      %v711 = vadd.f32 0.0, %v710
      %712 = vmatmul.f32.gmra.mxu0 %v691
      %v713 = vpop.f32.mrf.mxu0
      %v714 = vadd.f32 0.0, %v713
      %715 = vdwg.mxu0
      %716 = vmatpush.msra.mxu0 0.0
      %717 = vmatpush.msra.mxu0 0.0
      %718 = vmatpush.msra.mxu0 0.0
      %719 = vmatpush.msra.mxu0 0.0
      %720 = vmatpush.msra.mxu0 0.0
      %721 = vmatpush.msra.mxu0 0.0
      %722 = vmatpush.msra.mxu0 0.0
      %723 = vmatpush.msra.mxu0 0.0
      %724 = vmatpush.msra.mxu0 0.0
      %725 = vmatpush.msra.mxu0 0.0
      %726 = vmatpush.msra.mxu0 0.0
      %727 = vmatpush.msra.mxu0 0.0
      %728 = vmatpush.msra.mxu0 %v683
      %729 = vmatpush.msra.mxu0 %v681
      %730 = vmatpush.msra.mxu0 %v679
      %731 = vmatpush.msra.mxu0 %v677
      %732 = vmatmul.f32.gmra.mxu0 %v688
      %v733 = vpop.f32.mrf.mxu0
      %v734 = vadd.f32 0.0, %v733
      %735 = vmatmul.f32.gmra.mxu0 %v691
      %v736 = vpop.f32.mrf.mxu0
      %v737 = vadd.f32 0.0, %v736
      %738 = vdwg.mxu0
      %v739 = vadd.f32 %v252, %v711
      %v740 = vadd.f32 %v253, %v734
      %v741 = vadd.f32 %v254, %v714
      %v742 = vadd.f32 %v255, %v737
      %743 = vrot.lane.b32.xlu0 %v739, 17
      %v744 = vpop.permute.xlu0 %743
      %745 = vrot.lane.b32.xlu0 %v740, 17
      %v746 = vpop.permute.xlu0 %745
      %v747 = vsel %vm262, %v744, %v746
      %v748 = vsel %vm262, %v746, %v744
      %v749 = vld [vmem:[%s1] sm:$0x3]
      %v751 = vperm.slane %v749, 0
      %v752 = vperm.slane %v749, 1
      %v755 = vmul.f32 %v748, %v751
      %v756 = vmul.f32 %v747, %v752
      %757 = vst [vmem:[#allocation2] sm:$0xff] %v755
      %758 = vst [vmem:[#allocation2 + $0x8] sm:$0xff] %v756
      %759 = vrot.lane.b32.xlu0 %v739, 16
      %v760 = vpop.permute.xlu0 %759
      %761 = vrot.lane.b32.xlu0 %v740, 16
      %v762 = vpop.permute.xlu0 %761
      %v763 = vsel %vm279, %v760, %v762
      %v764 = vsel %vm279, %v762, %v760
      %v765 = vld [vmem:[%s282] sm:$0x3]
      %v767 = vperm.slane %v765, 0
      %v768 = vperm.slane %v765, 1
      %v771 = vmul.f32 %v764, %v767
      %v772 = vmul.f32 %v763, %v768
      %773 = vst [vmem:[#allocation2 + $0x10] sm:$0xff] %v771
      %774 = vst [vmem:[#allocation2 + $0x18] sm:$0xff] %v772
      %775 = vrot.lane.b32.xlu0 %v739, 15
      %v776 = vpop.permute.xlu0 %775
      %777 = vrot.lane.b32.xlu0 %v740, 15
      %v778 = vpop.permute.xlu0 %777
      %v779 = vsel %vm297, %v776, %v778
      %v780 = vsel %vm297, %v778, %v776
      %v781 = vld [vmem:[%s300] sm:$0x3]
      %v783 = vperm.slane %v781, 0
      %v784 = vperm.slane %v781, 1
      %v787 = vmul.f32 %v780, %v783
      %v788 = vmul.f32 %v779, %v784
      %789 = vst [vmem:[#allocation2 + $0x20] sm:$0xff] %v787
      %790 = vst [vmem:[#allocation2 + $0x28] sm:$0xff] %v788
      %791 = vrot.lane.b32.xlu0 %v739, 1
      %v792 = vpop.permute.xlu0 %791
      %793 = vrot.lane.b32.xlu0 %v740, 1
      %v794 = vpop.permute.xlu0 %793
      %v795 = vsel %vm315, %v792, %v794
      %v796 = vsel %vm315, %v794, %v792
      %v797 = vld [vmem:[%s318] sm:$0x3]
      %v799 = vperm.slane %v797, 0
      %v800 = vperm.slane %v797, 1
      %v803 = vmul.f32 %v796, %v799
      %v804 = vmul.f32 %v795, %v800
      %805 = vst [vmem:[#allocation2 + $0x30] sm:$0xff] %v803
      %806 = vst [vmem:[#allocation2 + $0x38] sm:$0xff] %v804
      %v807 = vld [vmem:[%s329] sm:$0x3]
      %v809 = vperm.slane %v807, 0
      %v810 = vperm.slane %v807, 1
      %v813 = vmul.f32 %v739, %v809
      %v814 = vmul.f32 %v740, %v810
      %815 = vst [vmem:[#allocation2 + $0x40] sm:$0xff] %v813
      %816 = vst [vmem:[#allocation2 + $0x48] sm:$0xff] %v814
      %817 = vrot.lane.b32.xlu0 %v739, 127
      %v818 = vpop.permute.xlu0 %817
      %819 = vrot.lane.b32.xlu0 %v740, 127
      %v820 = vpop.permute.xlu0 %819
      %v821 = vsel %vm344, %v818, %v820
      %v822 = vsel %vm344, %v820, %v818
      %v823 = vld [vmem:[%s347] sm:$0x3]
      %v825 = vperm.slane %v823, 0
      %v826 = vperm.slane %v823, 1
      %v829 = vmul.f32 %v821, %v825
      %v830 = vmul.f32 %v822, %v826
      %831 = vst [vmem:[#allocation2 + $0x50] sm:$0xff] %v829
      %832 = vst [vmem:[#allocation2 + $0x58] sm:$0xff] %v830
      %833 = vrot.lane.b32.xlu0 %v739, 113
      %v834 = vpop.permute.xlu0 %833
      %835 = vrot.lane.b32.xlu0 %v740, 113
      %v836 = vpop.permute.xlu0 %835
      %v837 = vsel %vm362, %v834, %v836
      %v838 = vsel %vm362, %v836, %v834
      %v839 = vld [vmem:[%s365] sm:$0x3]
      %v841 = vperm.slane %v839, 0
      %v842 = vperm.slane %v839, 1
      %v845 = vmul.f32 %v837, %v841
      %v846 = vmul.f32 %v838, %v842
      %847 = vst [vmem:[#allocation2 + $0x60] sm:$0xff] %v845
      %848 = vst [vmem:[#allocation2 + $0x68] sm:$0xff] %v846
      %849 = vrot.lane.b32.xlu0 %v739, 112
      %v850 = vpop.permute.xlu0 %849
      %851 = vrot.lane.b32.xlu0 %v740, 112
      %v852 = vpop.permute.xlu0 %851
      %v853 = vsel %vm380, %v850, %v852
      %v854 = vsel %vm380, %v852, %v850
      %v855 = vld [vmem:[%s383] sm:$0x3]
      %v857 = vperm.slane %v855, 0
      %v858 = vperm.slane %v855, 1
      %v861 = vmul.f32 %v853, %v857
      %v862 = vmul.f32 %v854, %v858
      %863 = vst [vmem:[#allocation2 + $0x70] sm:$0xff] %v861
      %864 = vst [vmem:[#allocation2 + $0x78] sm:$0xff] %v862
      %865 = vrot.lane.b32.xlu0 %v739, 111
      %v866 = vpop.permute.xlu0 %865
      %867 = vrot.lane.b32.xlu0 %v740, 111
      %v868 = vpop.permute.xlu0 %867
      %v869 = vsel %vm398, %v866, %v868
      %v870 = vsel %vm398, %v868, %v866
      %v871 = vld [vmem:[%s401] sm:$0x3]
      %v873 = vperm.slane %v871, 0
      %v874 = vperm.slane %v871, 1
      %v877 = vmul.f32 %v869, %v873
      %v878 = vmul.f32 %v870, %v874
      %879 = vst [vmem:[#allocation2 + $0x80] sm:$0xff] %v877
      %880 = vst [vmem:[#allocation2 + $0x88] sm:$0xff] %v878
      %s881 = scalar_lea.vmem %s2, 32
      %v882 = vld [vmem:[%s881] sm:$0xff]
      %v883 = vld [vmem:[%s881 + $0x8] sm:$0xff]
      %v884 = vld [vmem:[%s881 + $0x10] sm:$0xff]
      %v885 = vld [vmem:[%s881 + $0x18] sm:$0xff]
      %v886 = vld [vmem:[#allocation2] sm:$0xff]
      %v887 = vld [vmem:[#allocation2 + $0x8] sm:$0xff]
      %v888 = vld [vmem:[#allocation2 + $0x10] sm:$0xff]
      %v889 = vld [vmem:[#allocation2 + $0x18] sm:$0xff]
      %v890 = vld [vmem:[#allocation2 + $0x20] sm:$0xff]
      %v891 = vld [vmem:[#allocation2 + $0x28] sm:$0xff]
      %v892 = vld [vmem:[#allocation2 + $0x30] sm:$0xff]
      %v893 = vld [vmem:[#allocation2 + $0x38] sm:$0xff]
      %v894 = vld [vmem:[#allocation2 + $0x40] sm:$0xff]
      %v895 = vld [vmem:[#allocation2 + $0x48] sm:$0xff]
      %v896 = vld [vmem:[#allocation2 + $0x50] sm:$0xff]
      %v897 = vld [vmem:[#allocation2 + $0x58] sm:$0xff]
      %v898 = vld [vmem:[#allocation2 + $0x60] sm:$0xff]
      %v899 = vld [vmem:[#allocation2 + $0x68] sm:$0xff]
      %v900 = vld [vmem:[#allocation2 + $0x70] sm:$0xff]
      %v901 = vld [vmem:[#allocation2 + $0x78] sm:$0xff]
      %v902 = vld [vmem:[#allocation2 + $0x80] sm:$0xff]
      %v903 = vld [vmem:[#allocation2 + $0x88] sm:$0xff]
      %s904 = scalar_lea.vmem %s3, 32
      %v905 = vld [vmem:[%s904] sm:$0xff]
      %v906 = vld [vmem:[%s904 + $0x8] sm:$0xff]
      %v907 = vld [vmem:[%s904 + $0x10] sm:$0xff]
      %v908 = vld [vmem:[%s904 + $0x18] sm:$0xff]
      %v910 = vsel %vm438, %v905, 0
      %v913 = vsel %vm438, %v906, 0
      %v916 = vsel %vm438, %v907, 0
      %v919 = vsel %vm438, %v908, 0
      %921 = vmatpush.msra.mxu0 0.0
      %922 = vmatpush.msra.mxu0 0.0
      %923 = vmatpush.msra.mxu0 0.0
      %924 = vmatpush.msra.mxu0 0.0
      %925 = vmatpush.msra.mxu0 0.0
      %926 = vmatpush.msra.mxu0 0.0
      %927 = vmatpush.msra.mxu0 0.0
      %928 = vmatpush.msra.mxu0 0.0
      %929 = vmatpush.msra.mxu0 0.0
      %930 = vmatpush.msra.mxu0 0.0
      %931 = vmatpush.msra.mxu0 0.0
      %932 = vmatpush.msra.mxu0 0.0
      %933 = vmatpush.msra.mxu0 0.0
      %934 = vmatpush.msra.mxu0 0.0
      %935 = vmatpush.msra.mxu0 %v741
      %936 = vmatpush.msra.mxu0 %v739
      %937 = vmatmul.f32.gmra.mxu0 %v910
      %v938 = vpop.f32.mrf.mxu0
      %v939 = vadd.f32 0.0, %v938
      %940 = vmatmul.f32.gmra.mxu0 %v913
      %v941 = vpop.f32.mrf.mxu0
      %v942 = vadd.f32 0.0, %v941
      %943 = vmatmul.f32.gmra.mxu0 %v916
      %v944 = vpop.f32.mrf.mxu0
      %v945 = vadd.f32 0.0, %v944
      %946 = vmatmul.f32.gmra.mxu0 %v919
      %v947 = vpop.f32.mrf.mxu0
      %v948 = vadd.f32 0.0, %v947
      %949 = vdwg.mxu0
      %950 = vmatpush.msra.mxu0 0.0
      %951 = vmatpush.msra.mxu0 0.0
      %952 = vmatpush.msra.mxu0 0.0
      %953 = vmatpush.msra.mxu0 0.0
      %954 = vmatpush.msra.mxu0 0.0
      %955 = vmatpush.msra.mxu0 0.0
      %956 = vmatpush.msra.mxu0 0.0
      %957 = vmatpush.msra.mxu0 0.0
      %958 = vmatpush.msra.mxu0 0.0
      %959 = vmatpush.msra.mxu0 0.0
      %960 = vmatpush.msra.mxu0 0.0
      %961 = vmatpush.msra.mxu0 0.0
      %962 = vmatpush.msra.mxu0 0.0
      %963 = vmatpush.msra.mxu0 0.0
      %964 = vmatpush.msra.mxu0 %v742
      %965 = vmatpush.msra.mxu0 %v740
      %966 = vmatmul.f32.gmra.mxu0 %v910
      %v967 = vpop.f32.mrf.mxu0
      %v968 = vadd.f32 0.0, %v967
      %969 = vmatmul.f32.gmra.mxu0 %v913
      %v970 = vpop.f32.mrf.mxu0
      %v971 = vadd.f32 0.0, %v970
      %972 = vmatmul.f32.gmra.mxu0 %v916
      %v973 = vpop.f32.mrf.mxu0
      %v974 = vadd.f32 0.0, %v973
      %975 = vmatmul.f32.gmra.mxu0 %v919
      %v976 = vpop.f32.mrf.mxu0
      %v977 = vadd.f32 0.0, %v976
      %978 = vdwg.mxu0
      %v980 = vsel %vm509, %v882, 0
      %v983 = vsel %vm509, %v883, 0
      %v986 = vsel %vm509, %v884, 0
      %v989 = vsel %vm509, %v885, 0
      %991 = vmatpush.msra.mxu0 0.0
      %992 = vmatpush.msra.mxu0 0.0
      %993 = vmatpush.msra.mxu0 0.0
      %994 = vmatpush.msra.mxu0 0.0
      %995 = vmatpush.msra.mxu0 0.0
      %996 = vmatpush.msra.mxu0 0.0
      %997 = vmatpush.msra.mxu0 0.0
      %998 = vmatpush.msra.mxu0 %v902
      %999 = vmatpush.msra.mxu0 %v900
      %1000 = vmatpush.msra.mxu0 %v898
      %1001 = vmatpush.msra.mxu0 %v896
      %1002 = vmatpush.msra.mxu0 %v894
      %1003 = vmatpush.msra.mxu0 %v892
      %1004 = vmatpush.msra.mxu0 %v890
      %1005 = vmatpush.msra.mxu0 %v888
      %1006 = vmatpush.msra.mxu0 %v886
      %1007 = vmatmul.f32.gmra.mxu0 %v980
      %v1008 = vpop.f32.mrf.mxu0
      %v1009 = vadd.f32 %v939, %v1008
      %1010 = vmatmul.f32.gmra.mxu0 %v983
      %v1011 = vpop.f32.mrf.mxu0
      %v1012 = vadd.f32 %v942, %v1011
      %1013 = vmatmul.f32.gmra.mxu0 %v986
      %v1014 = vpop.f32.mrf.mxu0
      %v1015 = vadd.f32 %v945, %v1014
      %1016 = vmatmul.f32.gmra.mxu0 %v989
      %v1017 = vpop.f32.mrf.mxu0
      %v1018 = vadd.f32 %v948, %v1017
      %1019 = vdwg.mxu0
      %1020 = vmatpush.msra.mxu0 0.0
      %1021 = vmatpush.msra.mxu0 0.0
      %1022 = vmatpush.msra.mxu0 0.0
      %1023 = vmatpush.msra.mxu0 0.0
      %1024 = vmatpush.msra.mxu0 0.0
      %1025 = vmatpush.msra.mxu0 0.0
      %1026 = vmatpush.msra.mxu0 0.0
      %1027 = vmatpush.msra.mxu0 %v903
      %1028 = vmatpush.msra.mxu0 %v901
      %1029 = vmatpush.msra.mxu0 %v899
      %1030 = vmatpush.msra.mxu0 %v897
      %1031 = vmatpush.msra.mxu0 %v895
      %1032 = vmatpush.msra.mxu0 %v893
      %1033 = vmatpush.msra.mxu0 %v891
      %1034 = vmatpush.msra.mxu0 %v889
      %1035 = vmatpush.msra.mxu0 %v887
      %1036 = vmatmul.f32.gmra.mxu0 %v980
      %v1037 = vpop.f32.mrf.mxu0
      %v1038 = vadd.f32 %v968, %v1037
      %1039 = vmatmul.f32.gmra.mxu0 %v983
      %v1040 = vpop.f32.mrf.mxu0
      %v1041 = vadd.f32 %v971, %v1040
      %1042 = vmatmul.f32.gmra.mxu0 %v986
      %v1043 = vpop.f32.mrf.mxu0
      %v1044 = vadd.f32 %v974, %v1043
      %1045 = vmatmul.f32.gmra.mxu0 %v989
      %v1046 = vpop.f32.mrf.mxu0
      %v1047 = vadd.f32 %v977, %v1046
      %1048 = vdwg.mxu0
      %s1049 = scalar_lea.vmem %s4, 32
      %v1050 = vld [vmem:[%s1049] sm:$0xff]
      %v1051 = vld [vmem:[%s1049 + $0x8] sm:$0xff]
      %v1052 = vld [vmem:[%s1049 + $0x10] sm:$0xff]
      %v1053 = vld [vmem:[%s1049 + $0x18] sm:$0xff]
      %1055 = vset.pattern.permute.xlu0 0
      %1056 = vperm.xlu0 %1055, %v1050
      %v1057 = vpop.permute.xlu0 %1056
      %1060 = vset.pattern.permute.xlu0 0
      %1061 = vperm.xlu0 %1060, %v1051
      %v1062 = vpop.permute.xlu0 %1061
      %1065 = vset.pattern.permute.xlu0 0
      %1066 = vperm.xlu0 %1065, %v1052
      %v1067 = vpop.permute.xlu0 %1066
      %1070 = vset.pattern.permute.xlu0 0
      %1071 = vperm.xlu0 %1070, %v1053
      %v1072 = vpop.permute.xlu0 %1071
      %v1074 = vadd.f32 %v1009, %v1057
      %v1075 = vadd.f32 %v1038, %v1057
      %v1076 = vadd.f32 %v1012, %v1062
      %v1077 = vadd.f32 %v1041, %v1062
      %v1078 = vadd.f32 %v1015, %v1067
      %v1079 = vadd.f32 %v1044, %v1067
      %v1080 = vadd.f32 %v1018, %v1072
      %v1081 = vadd.f32 %v1047, %v1072
      %v1082 = vmul.f32 %v1074, 0.5
      %v1083 = vmul.f32 %v1075, 0.5
      %v1084 = vmul.f32 %v1076, 0.5
      %v1085 = vmul.f32 %v1077, 0.5
      %v1086 = vmul.f32 %v1078, 0.5
      %v1087 = vmul.f32 %v1079, 0.5
      %v1088 = vmul.f32 %v1080, 0.5
      %v1089 = vmul.f32 %v1081, 0.5
      %v1090 = vmul.f32 %v1074, 0.044715
      %v1091 = vmul.f32 %v1075, 0.044715
      %v1092 = vmul.f32 %v1076, 0.044715
      %v1093 = vmul.f32 %v1077, 0.044715
      %v1094 = vmul.f32 %v1078, 0.044715
      %v1095 = vmul.f32 %v1079, 0.044715
      %v1096 = vmul.f32 %v1080, 0.044715
      %v1097 = vmul.f32 %v1081, 0.044715
      %v1098 = vmul.f32 %v1090, %v1074
      %v1099 = vmul.f32 %v1091, %v1075
      %v1100 = vmul.f32 %v1092, %v1076
      %v1101 = vmul.f32 %v1093, %v1077
      %v1102 = vmul.f32 %v1094, %v1078
      %v1103 = vmul.f32 %v1095, %v1079
      %v1104 = vmul.f32 %v1096, %v1080
      %v1105 = vmul.f32 %v1097, %v1081
      %v1106 = vmul.f32 %v1098, %v1074
      %v1107 = vmul.f32 %v1099, %v1075
      %v1108 = vmul.f32 %v1100, %v1076
      %v1109 = vmul.f32 %v1101, %v1077
      %v1110 = vmul.f32 %v1102, %v1078
      %v1111 = vmul.f32 %v1103, %v1079
      %v1112 = vmul.f32 %v1104, %v1080
      %v1113 = vmul.f32 %v1105, %v1081
      %v1114 = vadd.f32 %v1074, %v1106
      %v1115 = vadd.f32 %v1075, %v1107
      %v1116 = vadd.f32 %v1076, %v1108
      %v1117 = vadd.f32 %v1077, %v1109
      %v1118 = vadd.f32 %v1078, %v1110
      %v1119 = vadd.f32 %v1079, %v1111
      %v1120 = vadd.f32 %v1080, %v1112
      %v1121 = vadd.f32 %v1081, %v1113
      %v1122 = vmul.f32 %v1114, 0.7978846
      %v1123 = vmul.f32 %v1115, 0.7978846
      %v1124 = vmul.f32 %v1116, 0.7978846
      %v1125 = vmul.f32 %v1117, 0.7978846
      %v1126 = vmul.f32 %v1118, 0.7978846
      %v1127 = vmul.f32 %v1119, 0.7978846
      %v1128 = vmul.f32 %v1120, 0.7978846
      %v1129 = vmul.f32 %v1121, 0.7978846
      %v1130 = vtanh.pop %v1122
      %v1131 = vtanh.pop %v1123
      %v1132 = vtanh.pop %v1124
      %v1133 = vtanh.pop %v1125
      %v1134 = vtanh.pop %v1126
      %v1135 = vtanh.pop %v1127
      %v1136 = vtanh.pop %v1128
      %v1137 = vtanh.pop %v1129
      %v1138 = vadd.f32 %v1130, 1.0
      %v1139 = vadd.f32 %v1131, 1.0
      %v1140 = vadd.f32 %v1132, 1.0
      %v1141 = vadd.f32 %v1133, 1.0
      %v1142 = vadd.f32 %v1134, 1.0
      %v1143 = vadd.f32 %v1135, 1.0
      %v1144 = vadd.f32 %v1136, 1.0
      %v1145 = vadd.f32 %v1137, 1.0
      %v1146 = vmul.f32 %v1082, %v1138
      %v1147 = vmul.f32 %v1083, %v1139
      %v1148 = vmul.f32 %v1084, %v1140
      %v1149 = vmul.f32 %v1085, %v1141
      %v1150 = vmul.f32 %v1086, %v1142
      %v1151 = vmul.f32 %v1087, %v1143
      %v1152 = vmul.f32 %v1088, %v1144
      %v1153 = vmul.f32 %v1089, %v1145
      %s1154 = scalar_lea.vmem %s5, 16
      %v1155 = vld [vmem:[%s1154] sm:$0xff]
      %v1156 = vld [vmem:[%s1154 + $0x8] sm:$0xff]
      %v1158 = vsel %vm686, %v1155, 0
      %v1161 = vsel %vm686, %v1156, 0
      %1163 = vmatpush.msra.mxu0 0.0
      %1164 = vmatpush.msra.mxu0 0.0
      %1165 = vmatpush.msra.mxu0 0.0
      %1166 = vmatpush.msra.mxu0 0.0
      %1167 = vmatpush.msra.mxu0 0.0
      %1168 = vmatpush.msra.mxu0 0.0
      %1169 = vmatpush.msra.mxu0 0.0
      %1170 = vmatpush.msra.mxu0 0.0
      %1171 = vmatpush.msra.mxu0 0.0
      %1172 = vmatpush.msra.mxu0 0.0
      %1173 = vmatpush.msra.mxu0 0.0
      %1174 = vmatpush.msra.mxu0 0.0
      %1175 = vmatpush.msra.mxu0 %v1152
      %1176 = vmatpush.msra.mxu0 %v1150
      %1177 = vmatpush.msra.mxu0 %v1148
      %1178 = vmatpush.msra.mxu0 %v1146
      %1179 = vmatmul.f32.gmra.mxu0 %v1158
      %v1180 = vpop.f32.mrf.mxu0
      %v1181 = vadd.f32 0.0, %v1180
      %1182 = vmatmul.f32.gmra.mxu0 %v1161
      %v1183 = vpop.f32.mrf.mxu0
      %v1184 = vadd.f32 0.0, %v1183
      %1185 = vdwg.mxu0
      %1186 = vmatpush.msra.mxu0 0.0
      %1187 = vmatpush.msra.mxu0 0.0
      %1188 = vmatpush.msra.mxu0 0.0
      %1189 = vmatpush.msra.mxu0 0.0
      %1190 = vmatpush.msra.mxu0 0.0
      %1191 = vmatpush.msra.mxu0 0.0
      %1192 = vmatpush.msra.mxu0 0.0
      %1193 = vmatpush.msra.mxu0 0.0
      %1194 = vmatpush.msra.mxu0 0.0
      %1195 = vmatpush.msra.mxu0 0.0
      %1196 = vmatpush.msra.mxu0 0.0
      %1197 = vmatpush.msra.mxu0 0.0
      %1198 = vmatpush.msra.mxu0 %v1153
      %1199 = vmatpush.msra.mxu0 %v1151
      %1200 = vmatpush.msra.mxu0 %v1149
      %1201 = vmatpush.msra.mxu0 %v1147
      %1202 = vmatmul.f32.gmra.mxu0 %v1158
      %v1203 = vpop.f32.mrf.mxu0
      %v1204 = vadd.f32 0.0, %v1203
      %1205 = vmatmul.f32.gmra.mxu0 %v1161
      %v1206 = vpop.f32.mrf.mxu0
      %v1207 = vadd.f32 0.0, %v1206
      %1208 = vdwg.mxu0
      %v1209 = vadd.f32 %v739, %v1181
      %v1210 = vadd.f32 %v740, %v1204
      %v1211 = vadd.f32 %v741, %v1184
      %v1212 = vadd.f32 %v742, %v1207
      %1213 = vst [vmem:[%s251] sm:$0xff] %v1209
      %1214 = vst [vmem:[%s251 + $0x8] sm:$0xff] %v1210
      %1215 = vst [vmem:[%s251 + $0x10] sm:$0xff] %v1211
      %1216 = vst [vmem:[%s251 + $0x18] sm:$0xff] %v1212
      %p1217 = scmp.lt.s32.totalorder %s17, 1
      %s1218 = scalar_select %p1217, %s17, 1
      %s1219 = smul.addr %s1218, 4
      %s1220 = smul.addr %s1219, 8
      %s1221 = scalar_lea.vmem %s6, %s1220
      // Predicated region
      $region45: #{basic_stage_forward.1} parent=43 // pred_check
        %p1222 = pneg %p166
      $region46: #{basic_stage_forward.1} parent=43 // pred_check_branch
        %1224 = sbr.rel (%p1222) target = $region48
      $region47: #{basic_stage_forward.1} parent=43 // pred_region
        _
      $region48: #{basic_stage_forward.1} parent=43 // pred_fallthru
        _
    $region44: #{basic_stage_forward.1} parent=5 // pred_fallthru
      _
    %p1225 = scmp.le.s32.totalorder 2, %s12
    // Predicated region
    $region49: #{basic_stage_forward.1} parent=5 // pred_check
      %p1226 = pneg %p1225
    $region50: #{basic_stage_forward.1} parent=5 // pred_check_branch
      %1228 = sbr.rel (%p1226) target = $region52
    $region51: #{basic_stage_forward.1} parent=5 // pred_region
      %s1229 = ssub.s32 %s12, 2
      // Predicated region
      $region53: #{basic_stage_forward.1} parent=51 // pred_check
        %p1230 = pneg %p172
      $region54: #{basic_stage_forward.1} parent=51 // pred_check_branch
        %1232 = sbr.rel (%p1230) target = $region56
      $region55: #{basic_stage_forward.1} parent=51 // pred_region
        %p1233 = scmp.lt.s32.totalorder %s18, 1
        %s1234 = scalar_select %p1233, %s18, 1
        %s1235 = smul.addr %s1234, 4
        %s1236 = smul.addr %s1235, 8
        %s1237 = scalar_lea.vmem %s6, %s1236
      $region56: #{basic_stage_forward.1} parent=51 // pred_fallthru
        _
    $region52: #{basic_stage_forward.1} parent=5 // pred_fallthru
      _
  $region6: #{basic_stage_forward.1} parent=0 // loop_footer
    %s16 = sadd.s32 1, %s12
  $region7: #{basic_stage_forward.1} parent=0 // loop_footer_branch
    %11 = sbr.rel target = $region3
  $region8: #{basic_stage_forward.1} parent=0 // loop_exit
    _

</llo_original>
